<compile_context>
chip_gen: v5e
topology: v5e:2x2
jax: 0.10.0
libtpu: 0.0.40
codegen_flags: <defaults>
</compile_context>

<pallas_src>
import math
import jax
import jax.numpy as jnp
from jax.experimental import pallas as pl
from jax.experimental.pallas import tpu as pltpu


def mnist_gated_linear_enc_kernel(x_ref, w1_ref, b1_ref, w2_ref, b2_ref, o_ref):
    d_c = o_ref.shape[-1]

    # ----- layer 1: GatingLinear(784 -> dimc), lin+gate fused in one matmul -----
    xb = x_ref[...]                                                      # [TB, 784] bf16
    hg1 = jnp.dot(xb, w1_ref[...],
                  preferred_element_type=jnp.float32) + b1_ref[...]      # [TB, 2*dimc] f32
    h1 = hg1[:, :d_c]                                                    # lane-aligned split
    g1 = hg1[:, d_c:]
    y1 = pl.reciprocal(1.0 + jnp.exp(-g1), approx=True) * h1             # sigmoid(g) * h (EUP)

    # ----- layer 2: GatingLinear(dimc -> dimc) -----
    y1b = y1.astype(jnp.bfloat16)
    hg2 = jnp.dot(y1b, w2_ref[...],
                  preferred_element_type=jnp.float32) + b2_ref[...]      # [TB, 2*dimc] f32
    h2 = hg2[:, :d_c]
    g2 = hg2[:, d_c:]
    o_ref[...] = (pl.reciprocal(1.0 + jnp.exp(-g2), approx=True) * h2).astype(o_ref.dtype)


def _fold_wn(direction, scale, bias):
    """Fold WNlinear's scale/||dir||_row into a pre-transposed bf16 weight [in, out]."""
    direction = direction.astype(jnp.float32)
    norm = jnp.sqrt(jnp.sum(direction * direction, axis=1, keepdims=True))   # [out, 1]
    w = (scale.astype(jnp.float32)[:, None] / norm) * direction              # [out, in]
    return jnp.transpose(w).astype(jnp.bfloat16), bias.reshape(1, -1).astype(jnp.float32)


def mnist_gated_linear_enc(x, params, *, block_b=512, out_dtype=jnp.bfloat16):
    """
    x:      [B, 784] f32 (cast to bf16 internally)
    params: ((lin1, gate1), (lin2, gate2)); each entry is a torchkit-WNlinear
            parameter triple (direction [out, in], scale [out], bias [out]).
    """
    (lin1, gate1), (lin2, gate2) = params
    w1l, b1l = _fold_wn(*lin1)
    w1g, b1g = _fold_wn(*gate1)
    w2l, b2l = _fold_wn(*lin2)
    w2g, b2g = _fold_wn(*gate2)

    # merged [in, 2*dimc] weights / [1, 2*dimc] biases: one MXU pass per layer
    w1 = jnp.concatenate([w1l, w1g], axis=1)
    b1 = jnp.concatenate([b1l, b1g], axis=1)
    w2 = jnp.concatenate([w2l, w2g], axis=1)
    b2 = jnp.concatenate([b2l, b2g], axis=1)

    B, d_in = x.shape
    d_c = w2.shape[0]
    assert d_c % 128 == 0, "dimc must be a multiple of 128 for the lane-aligned h/g split"

    # bf16 activations: halve dominant HBM traffic (kernel is HBM-bound with f32 x)
    xb = x.astype(jnp.bfloat16)

    # batch tile: multiple of 16 sublanes (bf16 packing); if one tile would cover
    # the whole batch, split into >=2 grid steps so v7x megacore shards the axis.
    ALIGN = 16
    if block_b >= B:
        if B >= 2 * ALIGN:
            block_b = ((pl.cdiv(B, 2) + ALIGN - 1) // ALIGN) * ALIGN
        else:
            block_b = B
    else:
        block_b = max(ALIGN, (block_b // ALIGN) * ALIGN)
    grid = (pl.cdiv(B, block_b),)

    def batch_spec(shape):
        return pl.BlockSpec(shape, lambda i: (i, 0))

    def const_spec(shape):  # same block every step -> stays VMEM-resident
        return pl.BlockSpec(shape, lambda i: (0, 0))

    return pl.pallas_call(
        mnist_gated_linear_enc_kernel,
        out_shape=jax.ShapeDtypeStruct((B, d_c), out_dtype),
        grid=grid,
        in_specs=[
            batch_spec((block_b, d_in)),                       # x (bf16)
            const_spec((d_in, 2 * d_c)), const_spec((1, 2 * d_c)),   # layer-1 [lin|gate] w, b
            const_spec((d_c, 2 * d_c)),  const_spec((1, 2 * d_c)),   # layer-2 [lin|gate] w, b
        ],
        out_specs=batch_spec((block_b, d_c)),
        compiler_params=pltpu.CompilerParams(
            dimension_semantics=("parallel",)),
    )(xb, w1, b1, w2, b2)


def _init_wn_params(key, dim_in, dim_out):
    """torchkit WNlinear.reset_parameters: uniform(+-1/sqrt(in)) dir/bias, scale=1."""
    k_dir, k_bias = jax.random.split(key)
    stdv = 1.0 / math.sqrt(dim_in)
    direction = jax.random.uniform(k_dir, (dim_out, dim_in), jnp.float32, -stdv, stdv)
    scale = jnp.ones((dim_out,), jnp.float32)
    bias = jax.random.uniform(k_bias, (dim_out,), jnp.float32, -stdv, stdv)
    return direction, scale, bias


def _reference(x, params):
    """Pure-JAX reference of the same math; mirrors the kernel's matmul precision
    (bf16 matmul inputs, f32 accumulation), exact sigmoid, f32 output."""
    def wn(h, direction, scale, bias):
        norm = jnp.sqrt(jnp.sum(direction * direction, axis=1, keepdims=True))
        w = (scale[:, None] / norm) * direction                                   # [out, in]
        y = jnp.dot(h.astype(jnp.bfloat16), w.T.astype(jnp.bfloat16),
                    preferred_element_type=jnp.float32)
        return y + bias[None, :]

    h = x
    for lin, gate in params:
        h = (1.0 / (1.0 + jnp.exp(-wn(h, *gate)))) * wn(h, *lin)
    return h


if __name__ == "__main__":
    B, D_IN, DIMC = 128, 784, 256       # 784 fixed by the module; dimc chosen lane-dense
    key = jax.random.PRNGKey(0)
    k_x, k1l, k1g, k2l, k2g = jax.random.split(key, 5)

    x = jax.random.normal(k_x, (B, D_IN), jnp.float32)
    params = (
        (_init_wn_params(k1l, D_IN, DIMC), _init_wn_params(k1g, D_IN, DIMC)),   # GatingLinear(784, dimc)
        (_init_wn_params(k2l, DIMC, DIMC), _init_wn_params(k2g, DIMC, DIMC)),   # GatingLinear(dimc, dimc)
    )

    out = mnist_gated_linear_enc(x, params)   # block_b capped to B/2 -> 2-step parallel grid
    out = jax.block_until_ready(out)

    ref = _reference(x, params)
    assert out.shape == (B, DIMC)
    out_f32 = out.astype(jnp.float32)
    max_err = float(jnp.max(jnp.abs(out_f32 - ref)))
    assert jnp.allclose(out_f32, ref, atol=2e-2, rtol=2e-2), (
        f"mismatch vs pure-JAX reference (max abs err {max_err})")

    print("KERNEL_OK")
</pallas_src>

<mosaic_0001>
module attributes {stable_mosaic.version = 11 : i64} {
  func.func @mnist_gated_linear_enc_kernel(%arg0: i32, %arg1: memref<64x784xbf16, #tpu.memory_space<vmem>>, %arg2: memref<784x512xbf16, #tpu.memory_space<vmem>>, %arg3: memref<1x512xf32, #tpu.memory_space<vmem>>, %arg4: memref<256x512xbf16, #tpu.memory_space<vmem>>, %arg5: memref<1x512xf32, #tpu.memory_space<vmem>>, %arg6: memref<64x256xbf16, #tpu.memory_space<vmem>>) attributes {dimension_semantics = [#tpu.dimension_semantics<parallel>], iteration_bounds = array<i64: 2>, scalar_prefetch = 0 : i64, scratch_operands = 0 : i64, tpu.core_type = #tpu.core_type<tc>, window_params = [{transform_indices = @transform_0, window_bounds = array<i64: 64, 784>}, {pipeline_mode = #tpu.pipeline_mode<synchronous>, transform_indices = @transform_1, window_bounds = array<i64: 784, 512>}, {pipeline_mode = #tpu.pipeline_mode<synchronous>, transform_indices = @transform_2, window_bounds = array<i64: 1, 512>}, {pipeline_mode = #tpu.pipeline_mode<synchronous>, transform_indices = @transform_3, window_bounds = array<i64: 256, 512>}, {pipeline_mode = #tpu.pipeline_mode<synchronous>, transform_indices = @transform_4, window_bounds = array<i64: 1, 512>}, {transform_indices = @transform_5, window_bounds = array<i64: 64, 256>}]} {
    %c0 = arith.constant 0 : index
    %c0_0 = arith.constant 0 : index
    %0 = vector.load %arg1[%c0, %c0_0] : memref<64x784xbf16, #tpu.memory_space<vmem>>, vector<64x784xbf16>
    %c0_1 = arith.constant 0 : index
    %c0_2 = arith.constant 0 : index
    %1 = vector.load %arg2[%c0_1, %c0_2] : memref<784x512xbf16, #tpu.memory_space<vmem>>, vector<784x512xbf16>
    %cst = arith.constant dense<0.000000e+00> : vector<64x512xf32>
    %2 = tpu.matmul %0, %1, %cst {dimension_numbers = #tpu.dot_dimension_numbers<[1], [0], [0], [1], [0, 0, 1, 1], [], []>} : vector<64x784xbf16>, vector<784x512xbf16>, vector<64x512xf32> -> vector<64x512xf32>
    %c0_3 = arith.constant 0 : index
    %c0_4 = arith.constant 0 : index
    %3 = vector.load %arg3[%c0_3, %c0_4] : memref<1x512xf32, #tpu.memory_space<vmem>>, vector<1x512xf32>
    %4 = vector.broadcast %3 : vector<1x512xf32> to vector<64x512xf32>
    %5 = arith.addf %2, %4 : vector<64x512xf32>
    %6 = vector.extract_strided_slice %5 {offsets = [0, 0], sizes = [64, 256], strides = [1, 1]} : vector<64x512xf32> to vector<64x256xf32>
    %7 = vector.extract_strided_slice %5 {offsets = [0, 256], sizes = [64, 256], strides = [1, 1]} : vector<64x512xf32> to vector<64x256xf32>
    %cst_5 = arith.constant 0.000000e+00 : f32
    %8 = vector.broadcast %cst_5 : f32 to vector<64x256xf32>
    %9 = arith.subf %8, %7 : vector<64x256xf32>
    %10 = math.exp %9 : vector<64x256xf32>
    %cst_6 = arith.constant 1.000000e+00 : f32
    %11 = vector.broadcast %cst_6 : f32 to vector<64x256xf32>
    %12 = arith.addf %11, %10 : vector<64x256xf32>
    %13 = tpu.reciprocal %12 {approx = true} : vector<64x256xf32> -> vector<64x256xf32>
    %14 = arith.mulf %13, %6 : vector<64x256xf32>
    %15 = arith.truncf %14 : vector<64x256xf32> to vector<64x256xbf16>
    %c0_7 = arith.constant 0 : index
    %c0_8 = arith.constant 0 : index
    %16 = vector.load %arg4[%c0_7, %c0_8] : memref<256x512xbf16, #tpu.memory_space<vmem>>, vector<256x512xbf16>
    %cst_9 = arith.constant dense<0.000000e+00> : vector<64x512xf32>
    %17 = tpu.matmul %15, %16, %cst_9 {dimension_numbers = #tpu.dot_dimension_numbers<[1], [0], [0], [1], [0, 0, 1, 1], [], []>} : vector<64x256xbf16>, vector<256x512xbf16>, vector<64x512xf32> -> vector<64x512xf32>
    %c0_10 = arith.constant 0 : index
    %c0_11 = arith.constant 0 : index
    %18 = vector.load %arg5[%c0_10, %c0_11] : memref<1x512xf32, #tpu.memory_space<vmem>>, vector<1x512xf32>
    %19 = vector.broadcast %18 : vector<1x512xf32> to vector<64x512xf32>
    %20 = arith.addf %17, %19 : vector<64x512xf32>
    %21 = vector.extract_strided_slice %20 {offsets = [0, 0], sizes = [64, 256], strides = [1, 1]} : vector<64x512xf32> to vector<64x256xf32>
    %22 = vector.extract_strided_slice %20 {offsets = [0, 256], sizes = [64, 256], strides = [1, 1]} : vector<64x512xf32> to vector<64x256xf32>
    %cst_12 = arith.constant 0.000000e+00 : f32
    %23 = vector.broadcast %cst_12 : f32 to vector<64x256xf32>
    %24 = arith.subf %23, %22 : vector<64x256xf32>
    %25 = math.exp %24 : vector<64x256xf32>
    %cst_13 = arith.constant 1.000000e+00 : f32
    %26 = vector.broadcast %cst_13 : f32 to vector<64x256xf32>
    %27 = arith.addf %26, %25 : vector<64x256xf32>
    %28 = tpu.reciprocal %27 {approx = true} : vector<64x256xf32> -> vector<64x256xf32>
    %29 = arith.mulf %28, %21 : vector<64x256xf32>
    %30 = arith.truncf %29 : vector<64x256xf32> to vector<64x256xbf16>
    %c0_14 = arith.constant 0 : index
    %c0_15 = arith.constant 0 : index
    %31 = vector.load %arg6[%c0_14, %c0_15] : memref<64x256xbf16, #tpu.memory_space<vmem>>, vector<64x256xbf16>
    tpu.vector_store %arg6[%c0_14, %c0_15], %30 {strides = array<i32>} : memref<64x256xbf16, #tpu.memory_space<vmem>>, vector<64x256xbf16>,
    return
  }
  func.func @transform_0(%arg0: i32) -> (i32, i32) {
    %c0_i32 = arith.constant 0 : i32
    %c0_i32_0 = arith.constant 0 : i32
    return %arg0, %c0_i32 : i32, i32
  }
  func.func @transform_1(%arg0: i32) -> (i32, i32) {
    %c0_i32 = arith.constant 0 : i32
    %c0_i32_0 = arith.constant 0 : i32
    %c0_i32_1 = arith.constant 0 : i32
    return %c0_i32, %c0_i32_0 : i32, i32
  }
  func.func @transform_2(%arg0: i32) -> (i32, i32) {
    %c0_i32 = arith.constant 0 : i32
    %c0_i32_0 = arith.constant 0 : i32
    %c0_i32_1 = arith.constant 0 : i32
    return %c0_i32, %c0_i32_0 : i32, i32
  }
  func.func @transform_3(%arg0: i32) -> (i32, i32) {
    %c0_i32 = arith.constant 0 : i32
    %c0_i32_0 = arith.constant 0 : i32
    %c0_i32_1 = arith.constant 0 : i32
    return %c0_i32, %c0_i32_0 : i32, i32
  }
  func.func @transform_4(%arg0: i32) -> (i32, i32) {
    %c0_i32 = arith.constant 0 : i32
    %c0_i32_0 = arith.constant 0 : i32
    %c0_i32_1 = arith.constant 0 : i32
    return %c0_i32, %c0_i32_0 : i32, i32
  }
  func.func @transform_5(%arg0: i32) -> (i32, i32) {
    %c0_i32 = arith.constant 0 : i32
    %c0_i32_0 = arith.constant 0 : i32
    return %arg0, %c0_i32 : i32, i32
  }
}

</mosaic_0001>

<llo_original>
// kernel: tpu_custom_call.1
$region0: #{tpu_custom_call.1}
  #allocation0 [shape = 'u32[]', space=smem, size = 0x4, offset = 0x4, fixed_abs, tag = 'smem constant byte address 0x4 - core index']
  #allocation1 [shape = 'u32[72,128]{1,0:T(1,128)}', space=vmem, size = 0x9000, scoped, tag = 'internal scratch']
  %s0 = inlined_call_operand.vmem [shape: bf16[128,784], index: 0, kind: input, shape index: {}]
  %s1 = inlined_call_operand.hbm [shape: bf16[784,512], index: 1, kind: input, shape index: {}]
  %s2 = inlined_call_operand.vmem [shape: f32[1,512], index: 2, kind: input, shape index: {}]
  %s3 = inlined_call_operand.vmem [shape: bf16[256,512], index: 3, kind: input, shape index: {}]
  %s4 = inlined_call_operand.vmem [shape: f32[1,512], index: 4, kind: input, shape index: {}]
  %s5 = inlined_call_operand.hbm [shape: bf16[128,256], index: 5, kind: output, shape index: {}]
  %s6 = sld [smem:[#allocation0]]
  $region57: #{tpu_custom_call.1} parent=0
    _
  %s8 = ssub.s32 1, %s6
  %s9 = scalar_select 0, %s8, %s6
  $region1: #{tpu_custom_call.1} parent=0
    #allocation2 [shape = 'u8[802816]{0}', space=vmem, size = 0xc4000, scoped, tag = 'input window, operand 1, single buffered']
    #allocation3 [shape = 's32[2]{0}', space=sflag, size = 0x8, scoped, tag = 'scoped memory for tpu_custom_call.1']
    #allocation4 [shape = 's32[2]{0}', space=sflag, size = 0x8, scoped, tag = 'scoped memory for tpu_custom_call.1']
    #allocation5 [shape = 'u8[65536]{0}', space=vmem, size = 0x10000, scoped, tag = 'output window, operand 0']
    %10 = vsyncpa [#allocation3], 0
    %11 = vsyncpa [#allocation4], 0
    %s12 = scalar_lea.sflag [#allocation4], 1
    %13 = vsyncpa %s12, 0
    loop: start=0, step=1, limit=4
    $region2: #{tpu_custom_call.1} parent=1 // loop_pre_header
      _
    $region3: #{tpu_custom_call.1} parent=1 // loop_header
      %s15 = sphi 0, %s19
      %p16 = scmp.ge.s32.totalorder %s15, 4
      %s25 = sphi 0, %s27
      %s28 = sphi 0, %s25
      %s29 = sphi 0, %s28
      %s45 = sphi 0, %s29
      %s49 = sphi 0, %s49
      %s51 = sphi 0, %s49
      %s52 = sphi 0, %s51
      %s66 = sphi 0, %s52
      %s70 = sphi 0, %s70
      %s72 = sphi 0, %s70
      %s73 = sphi 0, %s72
      %s87 = sphi 0, %s73
      %s91 = sphi 0, %s91
      %s93 = sphi 0, %s91
      %s94 = sphi 0, %s93
      %s108 = sphi 0, %s94
      %s112 = sphi 0, %s112
      %s114 = sphi 0, %s112
      %s115 = sphi 0, %s114
      %s129 = sphi 0, %s115
      %s135 = sphi 0, %s137
      %s138 = sphi 0, %s135
      %s139 = sphi 0, %s138
      %s155 = sphi 0, %s139
    $region4: #{tpu_custom_call.1} parent=1 // loop_header_branch
      %18 = sbr.rel (%p16) target = $region8
    $region5: #{tpu_custom_call.1} parent=1 // loop_body
      %s20 = ssub.s32 %s15, 1
      %s21 = ssub.s32 %s15, 2
      %s22 = sadd.s32 %s15, 1
      %s23 = ssub.s32 %s15, %s22
      %p24 = scmp.eq.s32.totalorder %s23, 0
      %s26 = sadd.s32 %s25, 1
      %s27 = scalar_select %p24, %s25, %s26
      %p30 = pneg %p24
      %p31 = scmp.eq.s32.totalorder %s15, 1
      %p32 = por %p30, %p31
      %p33 = scmp.ne.s32.totalorder %s25, %s28
      %p34 = scmp.eq.s32.totalorder %s15, 0
      %p35 = por %p33, %p34
      %p36 = scmp.ne.s32.totalorder %s25, %s28
      %p37 = scmp.eq.s32.totalorder %s20, 1
      %p38 = por %p36, %p37
      %p39 = scmp.ne.s32.totalorder %s28, %s29
      %p40 = scmp.eq.s32.totalorder %s20, 0
      %p41 = por %p39, %p40
      %p42 = scmp.ne.s32.totalorder %s28, %s29
      %p43 = scmp.eq.s32.totalorder %s21, 1
      %p44 = por %p42, %p43
      %p46 = scmp.ne.s32.totalorder %s29, %s45
      %p47 = scmp.eq.s32.totalorder %s21, 0
      %p48 = por %p46, %p47
      %s50 = sadd.s32 %s49, 1
      %p53 = scmp.eq.s32.totalorder %s15, 1
      %p54 = scmp.ne.s32.totalorder %s49, %s51
      %p55 = scmp.eq.s32.totalorder %s15, 0
      %p56 = por %p54, %p55
      %p57 = scmp.ne.s32.totalorder %s49, %s51
      %p58 = scmp.eq.s32.totalorder %s20, 1
      %p59 = por %p57, %p58
      %p60 = scmp.ne.s32.totalorder %s51, %s52
      %p61 = scmp.eq.s32.totalorder %s20, 0
      %p62 = por %p60, %p61
      %p63 = scmp.ne.s32.totalorder %s51, %s52
      %p64 = scmp.eq.s32.totalorder %s21, 1
      %p65 = por %p63, %p64
      %p67 = scmp.ne.s32.totalorder %s52, %s66
      %p68 = scmp.eq.s32.totalorder %s21, 0
      %p69 = por %p67, %p68
      %s71 = sadd.s32 %s70, 1
      %p74 = scmp.eq.s32.totalorder %s15, 1
      %p75 = scmp.ne.s32.totalorder %s70, %s72
      %p76 = scmp.eq.s32.totalorder %s15, 0
      %p77 = por %p75, %p76
      %p78 = scmp.ne.s32.totalorder %s70, %s72
      %p79 = scmp.eq.s32.totalorder %s20, 1
      %p80 = por %p78, %p79
      %p81 = scmp.ne.s32.totalorder %s72, %s73
      %p82 = scmp.eq.s32.totalorder %s20, 0
      %p83 = por %p81, %p82
      %p84 = scmp.ne.s32.totalorder %s72, %s73
      %p85 = scmp.eq.s32.totalorder %s21, 1
      %p86 = por %p84, %p85
      %p88 = scmp.ne.s32.totalorder %s73, %s87
      %p89 = scmp.eq.s32.totalorder %s21, 0
      %p90 = por %p88, %p89
      %s92 = sadd.s32 %s91, 1
      %p95 = scmp.eq.s32.totalorder %s15, 1
      %p96 = scmp.ne.s32.totalorder %s91, %s93
      %p97 = scmp.eq.s32.totalorder %s15, 0
      %p98 = por %p96, %p97
      %p99 = scmp.ne.s32.totalorder %s91, %s93
      %p100 = scmp.eq.s32.totalorder %s20, 1
      %p101 = por %p99, %p100
      %p102 = scmp.ne.s32.totalorder %s93, %s94
      %p103 = scmp.eq.s32.totalorder %s20, 0
      %p104 = por %p102, %p103
      %p105 = scmp.ne.s32.totalorder %s93, %s94
      %p106 = scmp.eq.s32.totalorder %s21, 1
      %p107 = por %p105, %p106
      %p109 = scmp.ne.s32.totalorder %s94, %s108
      %p110 = scmp.eq.s32.totalorder %s21, 0
      %p111 = por %p109, %p110
      %s113 = sadd.s32 %s112, 1
      %p116 = scmp.eq.s32.totalorder %s15, 1
      %p117 = scmp.ne.s32.totalorder %s112, %s114
      %p118 = scmp.eq.s32.totalorder %s15, 0
      %p119 = por %p117, %p118
      %p120 = scmp.ne.s32.totalorder %s112, %s114
      %p121 = scmp.eq.s32.totalorder %s20, 1
      %p122 = por %p120, %p121
      %p123 = scmp.ne.s32.totalorder %s114, %s115
      %p124 = scmp.eq.s32.totalorder %s20, 0
      %p125 = por %p123, %p124
      %p126 = scmp.ne.s32.totalorder %s114, %s115
      %p127 = scmp.eq.s32.totalorder %s21, 1
      %p128 = por %p126, %p127
      %p130 = scmp.ne.s32.totalorder %s115, %s129
      %p131 = scmp.eq.s32.totalorder %s21, 0
      %p132 = por %p130, %p131
      %s133 = ssub.s32 %s15, %s22
      %p134 = scmp.eq.s32.totalorder %s133, 0
      %s136 = sadd.s32 %s135, 1
      %s137 = scalar_select %p134, %s135, %s136
      %p140 = pneg %p134
      %p141 = scmp.eq.s32.totalorder %s15, 1
      %p142 = por %p140, %p141
      %p143 = scmp.ne.s32.totalorder %s135, %s138
      %p144 = scmp.eq.s32.totalorder %s15, 0
      %p145 = por %p143, %p144
      %p146 = scmp.ne.s32.totalorder %s135, %s138
      %p147 = scmp.eq.s32.totalorder %s20, 1
      %p148 = por %p146, %p147
      %p149 = scmp.ne.s32.totalorder %s138, %s139
      %p150 = scmp.eq.s32.totalorder %s20, 0
      %p151 = por %p149, %p150
      %p152 = scmp.ne.s32.totalorder %s138, %s139
      %p153 = scmp.eq.s32.totalorder %s21, 1
      %p154 = por %p152, %p153
      %p156 = scmp.ne.s32.totalorder %s139, %s155
      %p157 = scmp.eq.s32.totalorder %s21, 0
      %p158 = por %p156, %p157
      %p159 = scmp.le.s32.totalorder 1, %s15
      %p160 = scmp.lt.s32.totalorder %s15, 3
      %p161 = pnand %p159, %p160
      %p162 = pneg %p161
      // Predicated region
      $region9: #{tpu_custom_call.1} parent=5 // pred_check
        _
      $region10: #{tpu_custom_call.1} parent=5 // pred_check_branch
        %164 = sbr.rel (%p161) target = $region12
      $region11: #{tpu_custom_call.1} parent=5 // pred_region
        %s165 = ssub.s32 %s15, 1
        // Predicated region
        $region13: #{tpu_custom_call.1} parent=11 // pred_check
          %p166 = pneg %p62
        $region14: #{tpu_custom_call.1} parent=11 // pred_check_branch
          %168 = sbr.rel (%p166) target = $region16
        $region15: #{tpu_custom_call.1} parent=11 // pred_region
          %170 = vsyncadd [#allocation3], 0
          %s171 = sshll.u32 %s1, 4
          %s172 = int_to_ptr.hbm [resolvable:$true] %s171
          %s173 = sshll.u32 [#allocation2], 4
          %s174 = int_to_ptr.vmem [resolvable:$true] %s173
          %179 = dma.hbm_to_vmem [thread:$0]  %s172, 25088, %s174, [#allocation3], 256, 256, 16
        $region16: #{tpu_custom_call.1} parent=11 // pred_fallthru
          _
        // Predicated region
        $region17: #{tpu_custom_call.1} parent=11 // pred_check
          %p180 = pneg %p83
        $region18: #{tpu_custom_call.1} parent=11 // pred_check_branch
          %182 = sbr.rel (%p180) target = $region20
        $region19: #{tpu_custom_call.1} parent=11 // pred_region
          _
        $region20: #{tpu_custom_call.1} parent=11 // pred_fallthru
          _
        // Predicated region
        $region21: #{tpu_custom_call.1} parent=11 // pred_check
          %p183 = pneg %p104
        $region22: #{tpu_custom_call.1} parent=11 // pred_check_branch
          %185 = sbr.rel (%p183) target = $region24
        $region23: #{tpu_custom_call.1} parent=11 // pred_region
          _
        $region24: #{tpu_custom_call.1} parent=11 // pred_fallthru
          _
        // Predicated region
        $region25: #{tpu_custom_call.1} parent=11 // pred_check
          %p186 = pneg %p125
        $region26: #{tpu_custom_call.1} parent=11 // pred_check_branch
          %188 = sbr.rel (%p186) target = $region28
        $region27: #{tpu_custom_call.1} parent=11 // pred_region
          _
        $region28: #{tpu_custom_call.1} parent=11 // pred_fallthru
          _
      $region12: #{tpu_custom_call.1} parent=5 // pred_fallthru
        _
      %p189 = scmp.lt.s32.totalorder %s15, 2
      // Predicated region
      $region29: #{tpu_custom_call.1} parent=5 // pred_check
        %p190 = pneg %p189
      $region30: #{tpu_custom_call.1} parent=5 // pred_check_branch
        %192 = sbr.rel (%p190) target = $region32
      $region31: #{tpu_custom_call.1} parent=5 // pred_region
        // Predicated region
        $region33: #{tpu_custom_call.1} parent=31 // pred_check
          %p193 = pneg %p35
        $region34: #{tpu_custom_call.1} parent=31 // pred_check_branch
          %195 = sbr.rel (%p193) target = $region36
        $region35: #{tpu_custom_call.1} parent=31 // pred_region
          %s196 = smul.u32 8, %s15
          %p197 = scmp.lt.s32.totalorder %s196, 15
          %s198 = scalar_select %p197, %s196, 15
          %s199 = smul.addr %s198, 7
          %s200 = smul.addr %s199, 4
          %s201 = scalar_lea.vmem %s0, %s200
          %s202 = smul.u32 8, %s15
        $region36: #{tpu_custom_call.1} parent=31 // pred_fallthru
          _
      $region32: #{tpu_custom_call.1} parent=5 // pred_fallthru
        _
      %p203 = scmp.le.s32.totalorder 1, %s15
      %p204 = scmp.lt.s32.totalorder %s15, 3
      %p205 = pnand %p203, %p204
      %p206 = pneg %p205
      // Predicated region
      $region37: #{tpu_custom_call.1} parent=5 // pred_check
        _
      $region38: #{tpu_custom_call.1} parent=5 // pred_check_branch
        %208 = sbr.rel (%p205) target = $region40
      $region39: #{tpu_custom_call.1} parent=5 // pred_region
        %s209 = ssub.s32 %s15, 1
        // Predicated region
        $region41: #{tpu_custom_call.1} parent=39 // pred_check
          %p210 = pneg %p62
        $region42: #{tpu_custom_call.1} parent=39 // pred_check_branch
          %212 = sbr.rel (%p210) target = $region44
        $region43: #{tpu_custom_call.1} parent=39 // pred_region
          %214 = dma.done [#allocation3], 25088
        $region44: #{tpu_custom_call.1} parent=39 // pred_fallthru
          _
        %s215 = smul.u32 8, %s20
        %p216 = scmp.lt.s32.totalorder %s215, 15
        %s217 = scalar_select %p216, %s215, 15
        %s218 = smul.addr %s217, 7
        %s219 = smul.addr %s218, 4
        %s220 = scalar_lea.vmem %s0, %s219
        %p221 = pneg %p41
        %p222 = pneg %p38
        %p223 = pneg %p62
        %p224 = pneg %p59
        %p225 = pneg %p83
        %p226 = pneg %p80
        %p227 = pneg %p104
        %p228 = pneg %p101
        %p229 = pneg %p125
        %p230 = pneg %p122
        %p231 = pneg %p151
        %p232 = pneg %p148
        %s233 = sand.u32 %s138, 1
        %s234 = scalar_lea.sflag [#allocation4], %s233
        %s235 = sand.u32 %s138, 1
        %s236 = smul.addr %s235, 64
        %s237 = scalar_lea.vmem [#allocation5], %s236
        %s238 = smul.u32 8, %s20
        %p239 = scmp.lt.s32.totalorder %s238, 15
        %s240 = scalar_select %p239, %s238, 15
        %s241 = smul.addr %s240, 7
        %s242 = smul.addr %s241, 4
        %s243 = scalar_lea.vmem %s0, %s242
        %s244 = smul.u32 8, %s20
        %s245 = smul.u32 8, %s20
        %v247 = vld [vmem:[%s243] sm:$0xff]
        %v248 = vld [vmem:[%s243 + $0x8] sm:$0xff]
        %v249 = vld [vmem:[%s243 + $0x10] sm:$0xff]
        %v250 = vld [vmem:[%s243 + $0x18] sm:$0xf]
        %v251 = vld [vmem:[%s243 + $0x1c] sm:$0xff]
        %v252 = vld [vmem:[%s243 + $0x24] sm:$0xff]
        %v253 = vld [vmem:[%s243 + $0x2c] sm:$0xff]
        %v254 = vld [vmem:[%s243 + $0x34] sm:$0xf]
        %v255 = vld [vmem:[%s243 + $0x38] sm:$0xff]
        %v256 = vld [vmem:[%s243 + $0x40] sm:$0xff]
        %v257 = vld [vmem:[%s243 + $0x48] sm:$0xff]
        %v258 = vld [vmem:[%s243 + $0x50] sm:$0xf]
        %v259 = vld [vmem:[%s243 + $0x54] sm:$0xff]
        %v260 = vld [vmem:[%s243 + $0x5c] sm:$0xff]
        %v261 = vld [vmem:[%s243 + $0x64] sm:$0xff]
        %v262 = vld [vmem:[%s243 + $0x6c] sm:$0xf]
        %v263 = vld [vmem:[%s243 + $0x70] sm:$0xff]
        %v264 = vld [vmem:[%s243 + $0x78] sm:$0xff]
        %v265 = vld [vmem:[%s243 + $0x80] sm:$0xff]
        %v266 = vld [vmem:[%s243 + $0x88] sm:$0xf]
        %v267 = vld [vmem:[%s243 + $0x8c] sm:$0xff]
        %v268 = vld [vmem:[%s243 + $0x94] sm:$0xff]
        %v269 = vld [vmem:[%s243 + $0x9c] sm:$0xff]
        %v270 = vld [vmem:[%s243 + $0xa4] sm:$0xf]
        %v271 = vld [vmem:[%s243 + $0xa8] sm:$0xff]
        %v272 = vld [vmem:[%s243 + $0xb0] sm:$0xff]
        %v273 = vld [vmem:[%s243 + $0xb8] sm:$0xff]
        %v274 = vld [vmem:[%s243 + $0xc0] sm:$0xf]
        %v275 = vld [vmem:[%s243 + $0xc4] sm:$0xff]
        %v276 = vld [vmem:[%s243 + $0xcc] sm:$0xff]
        %v277 = vld [vmem:[%s243 + $0xd4] sm:$0xff]
        %v278 = vld [vmem:[%s243 + $0xdc] sm:$0xf]
        %v279 = vld [vmem:[#allocation2] sm:$0xff]
        %v280 = vld [vmem:[#allocation2 + $0x8] sm:$0xff]
        %v281 = vld [vmem:[#allocation2 + $0x10] sm:$0xff]
        %v282 = vld [vmem:[#allocation2 + $0x18] sm:$0xff]
        %v283 = vld [vmem:[#allocation2 + $0x20] sm:$0xff]
        %v284 = vld [vmem:[#allocation2 + $0x28] sm:$0xff]
        %v285 = vld [vmem:[#allocation2 + $0x30] sm:$0xff]
        %v286 = vld [vmem:[#allocation2 + $0x38] sm:$0xff]
        %v287 = vld [vmem:[#allocation2 + $0x40] sm:$0xff]
        %v288 = vld [vmem:[#allocation2 + $0x48] sm:$0xff]
        %v289 = vld [vmem:[#allocation2 + $0x50] sm:$0xff]
        %v290 = vld [vmem:[#allocation2 + $0x58] sm:$0xff]
        %v291 = vld [vmem:[#allocation2 + $0x60] sm:$0xff]
        %v292 = vld [vmem:[#allocation2 + $0x68] sm:$0xff]
        %v293 = vld [vmem:[#allocation2 + $0x70] sm:$0xff]
        %v294 = vld [vmem:[#allocation2 + $0x78] sm:$0xff]
        %v295 = vld [vmem:[#allocation2 + $0x80] sm:$0xff]
        %v296 = vld [vmem:[#allocation2 + $0x88] sm:$0xff]
        %v297 = vld [vmem:[#allocation2 + $0x90] sm:$0xff]
        %v298 = vld [vmem:[#allocation2 + $0x98] sm:$0xff]
        %v299 = vld [vmem:[#allocation2 + $0xa0] sm:$0xff]
        %v300 = vld [vmem:[#allocation2 + $0xa8] sm:$0xff]
        %v301 = vld [vmem:[#allocation2 + $0xb0] sm:$0xff]
        %v302 = vld [vmem:[#allocation2 + $0xb8] sm:$0xff]
        %v303 = vld [vmem:[#allocation2 + $0xc0] sm:$0xff]
        %v304 = vld [vmem:[#allocation2 + $0xc8] sm:$0xff]
        %v305 = vld [vmem:[#allocation2 + $0xd0] sm:$0xff]
        %v306 = vld [vmem:[#allocation2 + $0xd8] sm:$0xff]
        %v307 = vld [vmem:[#allocation2 + $0xe0] sm:$0xff]
        %v308 = vld [vmem:[#allocation2 + $0xe8] sm:$0xff]
        %v309 = vld [vmem:[#allocation2 + $0xf0] sm:$0xff]
        %v310 = vld [vmem:[#allocation2 + $0xf8] sm:$0xff]
        %v311 = vld [vmem:[#allocation2 + $0x100] sm:$0xff]
        %v312 = vld [vmem:[#allocation2 + $0x108] sm:$0xff]
        %v313 = vld [vmem:[#allocation2 + $0x110] sm:$0xff]
        %v314 = vld [vmem:[#allocation2 + $0x118] sm:$0xff]
        %v315 = vld [vmem:[#allocation2 + $0x120] sm:$0xff]
        %v316 = vld [vmem:[#allocation2 + $0x128] sm:$0xff]
        %v317 = vld [vmem:[#allocation2 + $0x130] sm:$0xff]
        %v318 = vld [vmem:[#allocation2 + $0x138] sm:$0xff]
        %v319 = vld [vmem:[#allocation2 + $0x140] sm:$0xff]
        %v320 = vld [vmem:[#allocation2 + $0x148] sm:$0xff]
        %v321 = vld [vmem:[#allocation2 + $0x150] sm:$0xff]
        %v322 = vld [vmem:[#allocation2 + $0x158] sm:$0xff]
        %v323 = vld [vmem:[#allocation2 + $0x160] sm:$0xff]
        %v324 = vld [vmem:[#allocation2 + $0x168] sm:$0xff]
        %v325 = vld [vmem:[#allocation2 + $0x170] sm:$0xff]
        %v326 = vld [vmem:[#allocation2 + $0x178] sm:$0xff]
        %v327 = vld [vmem:[#allocation2 + $0x180] sm:$0xff]
        %v328 = vld [vmem:[#allocation2 + $0x188] sm:$0xff]
        %v329 = vld [vmem:[#allocation2 + $0x190] sm:$0xff]
        %v330 = vld [vmem:[#allocation2 + $0x198] sm:$0xff]
        %v331 = vld [vmem:[#allocation2 + $0x1a0] sm:$0xff]
        %v332 = vld [vmem:[#allocation2 + $0x1a8] sm:$0xff]
        %v333 = vld [vmem:[#allocation2 + $0x1b0] sm:$0xff]
        %v334 = vld [vmem:[#allocation2 + $0x1b8] sm:$0xff]
        %v335 = vld [vmem:[#allocation2 + $0x1c0] sm:$0xff]
        %v336 = vld [vmem:[#allocation2 + $0x1c8] sm:$0xff]
        %v337 = vld [vmem:[#allocation2 + $0x1d0] sm:$0xff]
        %v338 = vld [vmem:[#allocation2 + $0x1d8] sm:$0xff]
        %v339 = vld [vmem:[#allocation2 + $0x1e0] sm:$0xff]
        %v340 = vld [vmem:[#allocation2 + $0x1e8] sm:$0xff]
        %v341 = vld [vmem:[#allocation2 + $0x1f0] sm:$0xff]
        %v342 = vld [vmem:[#allocation2 + $0x1f8] sm:$0xff]
        %v343 = vld [vmem:[#allocation2 + $0x200] sm:$0xff]
        %v344 = vld [vmem:[#allocation2 + $0x208] sm:$0xff]
        %v345 = vld [vmem:[#allocation2 + $0x210] sm:$0xff]
        %v346 = vld [vmem:[#allocation2 + $0x218] sm:$0xff]
        %v347 = vld [vmem:[#allocation2 + $0x220] sm:$0xff]
        %v348 = vld [vmem:[#allocation2 + $0x228] sm:$0xff]
        %v349 = vld [vmem:[#allocation2 + $0x230] sm:$0xff]
        %v350 = vld [vmem:[#allocation2 + $0x238] sm:$0xff]
        %v351 = vld [vmem:[#allocation2 + $0x240] sm:$0xff]
        %v352 = vld [vmem:[#allocation2 + $0x248] sm:$0xff]
        %v353 = vld [vmem:[#allocation2 + $0x250] sm:$0xff]
        %v354 = vld [vmem:[#allocation2 + $0x258] sm:$0xff]
        %v355 = vld [vmem:[#allocation2 + $0x260] sm:$0xff]
        %v356 = vld [vmem:[#allocation2 + $0x268] sm:$0xff]
        %v357 = vld [vmem:[#allocation2 + $0x270] sm:$0xff]
        %v358 = vld [vmem:[#allocation2 + $0x278] sm:$0xff]
        %v359 = vld [vmem:[#allocation2 + $0x280] sm:$0xff]
        %v360 = vld [vmem:[#allocation2 + $0x288] sm:$0xff]
        %v361 = vld [vmem:[#allocation2 + $0x290] sm:$0xff]
        %v362 = vld [vmem:[#allocation2 + $0x298] sm:$0xff]
        %v363 = vld [vmem:[#allocation2 + $0x2a0] sm:$0xff]
        %v364 = vld [vmem:[#allocation2 + $0x2a8] sm:$0xff]
        %v365 = vld [vmem:[#allocation2 + $0x2b0] sm:$0xff]
        %v366 = vld [vmem:[#allocation2 + $0x2b8] sm:$0xff]
        %v367 = vld [vmem:[#allocation2 + $0x2c0] sm:$0xff]
        %v368 = vld [vmem:[#allocation2 + $0x2c8] sm:$0xff]
        %v369 = vld [vmem:[#allocation2 + $0x2d0] sm:$0xff]
        %v370 = vld [vmem:[#allocation2 + $0x2d8] sm:$0xff]
        %v371 = vld [vmem:[#allocation2 + $0x2e0] sm:$0xff]
        %v372 = vld [vmem:[#allocation2 + $0x2e8] sm:$0xff]
        %v373 = vld [vmem:[#allocation2 + $0x2f0] sm:$0xff]
        %v374 = vld [vmem:[#allocation2 + $0x2f8] sm:$0xff]
        %v375 = vld [vmem:[#allocation2 + $0x300] sm:$0xff]
        %v376 = vld [vmem:[#allocation2 + $0x308] sm:$0xff]
        %v377 = vld [vmem:[#allocation2 + $0x310] sm:$0xff]
        %v378 = vld [vmem:[#allocation2 + $0x318] sm:$0xff]
        %v379 = vld [vmem:[#allocation2 + $0x320] sm:$0xff]
        %v380 = vld [vmem:[#allocation2 + $0x328] sm:$0xff]
        %v381 = vld [vmem:[#allocation2 + $0x330] sm:$0xff]
        %v382 = vld [vmem:[#allocation2 + $0x338] sm:$0xff]
        %v383 = vld [vmem:[#allocation2 + $0x340] sm:$0xff]
        %v384 = vld [vmem:[#allocation2 + $0x348] sm:$0xff]
        %v385 = vld [vmem:[#allocation2 + $0x350] sm:$0xff]
        %v386 = vld [vmem:[#allocation2 + $0x358] sm:$0xff]
        %v387 = vld [vmem:[#allocation2 + $0x360] sm:$0xff]
        %v388 = vld [vmem:[#allocation2 + $0x368] sm:$0xff]
        %v389 = vld [vmem:[#allocation2 + $0x370] sm:$0xff]
        %v390 = vld [vmem:[#allocation2 + $0x378] sm:$0xff]
        %v391 = vld [vmem:[#allocation2 + $0x380] sm:$0xff]
        %v392 = vld [vmem:[#allocation2 + $0x388] sm:$0xff]
        %v393 = vld [vmem:[#allocation2 + $0x390] sm:$0xff]
        %v394 = vld [vmem:[#allocation2 + $0x398] sm:$0xff]
        %v395 = vld [vmem:[#allocation2 + $0x3a0] sm:$0xff]
        %v396 = vld [vmem:[#allocation2 + $0x3a8] sm:$0xff]
        %v397 = vld [vmem:[#allocation2 + $0x3b0] sm:$0xff]
        %v398 = vld [vmem:[#allocation2 + $0x3b8] sm:$0xff]
        %v399 = vld [vmem:[#allocation2 + $0x3c0] sm:$0xff]
        %v400 = vld [vmem:[#allocation2 + $0x3c8] sm:$0xff]
        %v401 = vld [vmem:[#allocation2 + $0x3d0] sm:$0xff]
        %v402 = vld [vmem:[#allocation2 + $0x3d8] sm:$0xff]
        %v403 = vld [vmem:[#allocation2 + $0x3e0] sm:$0xff]
        %v404 = vld [vmem:[#allocation2 + $0x3e8] sm:$0xff]
        %v405 = vld [vmem:[#allocation2 + $0x3f0] sm:$0xff]
        %v406 = vld [vmem:[#allocation2 + $0x3f8] sm:$0xff]
        %v407 = vld [vmem:[#allocation2 + $0x400] sm:$0xff]
        %v408 = vld [vmem:[#allocation2 + $0x408] sm:$0xff]
        %v409 = vld [vmem:[#allocation2 + $0x410] sm:$0xff]
        %v410 = vld [vmem:[#allocation2 + $0x418] sm:$0xff]
        %v411 = vld [vmem:[#allocation2 + $0x420] sm:$0xff]
        %v412 = vld [vmem:[#allocation2 + $0x428] sm:$0xff]
        %v413 = vld [vmem:[#allocation2 + $0x430] sm:$0xff]
        %v414 = vld [vmem:[#allocation2 + $0x438] sm:$0xff]
        %v415 = vld [vmem:[#allocation2 + $0x440] sm:$0xff]
        %v416 = vld [vmem:[#allocation2 + $0x448] sm:$0xff]
        %v417 = vld [vmem:[#allocation2 + $0x450] sm:$0xff]
        %v418 = vld [vmem:[#allocation2 + $0x458] sm:$0xff]
        %v419 = vld [vmem:[#allocation2 + $0x460] sm:$0xff]
        %v420 = vld [vmem:[#allocation2 + $0x468] sm:$0xff]
        %v421 = vld [vmem:[#allocation2 + $0x470] sm:$0xff]
        %v422 = vld [vmem:[#allocation2 + $0x478] sm:$0xff]
        %v423 = vld [vmem:[#allocation2 + $0x480] sm:$0xff]
        %v424 = vld [vmem:[#allocation2 + $0x488] sm:$0xff]
        %v425 = vld [vmem:[#allocation2 + $0x490] sm:$0xff]
        %v426 = vld [vmem:[#allocation2 + $0x498] sm:$0xff]
        %v427 = vld [vmem:[#allocation2 + $0x4a0] sm:$0xff]
        %v428 = vld [vmem:[#allocation2 + $0x4a8] sm:$0xff]
        %v429 = vld [vmem:[#allocation2 + $0x4b0] sm:$0xff]
        %v430 = vld [vmem:[#allocation2 + $0x4b8] sm:$0xff]
        %v431 = vld [vmem:[#allocation2 + $0x4c0] sm:$0xff]
        %v432 = vld [vmem:[#allocation2 + $0x4c8] sm:$0xff]
        %v433 = vld [vmem:[#allocation2 + $0x4d0] sm:$0xff]
        %v434 = vld [vmem:[#allocation2 + $0x4d8] sm:$0xff]
        %v435 = vld [vmem:[#allocation2 + $0x4e0] sm:$0xff]
        %v436 = vld [vmem:[#allocation2 + $0x4e8] sm:$0xff]
        %v437 = vld [vmem:[#allocation2 + $0x4f0] sm:$0xff]
        %v438 = vld [vmem:[#allocation2 + $0x4f8] sm:$0xff]
        %v439 = vld [vmem:[#allocation2 + $0x500] sm:$0xff]
        %v440 = vld [vmem:[#allocation2 + $0x508] sm:$0xff]
        %v441 = vld [vmem:[#allocation2 + $0x510] sm:$0xff]
        %v442 = vld [vmem:[#allocation2 + $0x518] sm:$0xff]
        %v443 = vld [vmem:[#allocation2 + $0x520] sm:$0xff]
        %v444 = vld [vmem:[#allocation2 + $0x528] sm:$0xff]
        %v445 = vld [vmem:[#allocation2 + $0x530] sm:$0xff]
        %v446 = vld [vmem:[#allocation2 + $0x538] sm:$0xff]
        %v447 = vld [vmem:[#allocation2 + $0x540] sm:$0xff]
        %v448 = vld [vmem:[#allocation2 + $0x548] sm:$0xff]
        %v449 = vld [vmem:[#allocation2 + $0x550] sm:$0xff]
        %v450 = vld [vmem:[#allocation2 + $0x558] sm:$0xff]
        %v451 = vld [vmem:[#allocation2 + $0x560] sm:$0xff]
        %v452 = vld [vmem:[#allocation2 + $0x568] sm:$0xff]
        %v453 = vld [vmem:[#allocation2 + $0x570] sm:$0xff]
        %v454 = vld [vmem:[#allocation2 + $0x578] sm:$0xff]
        %v455 = vld [vmem:[#allocation2 + $0x580] sm:$0xff]
        %v456 = vld [vmem:[#allocation2 + $0x588] sm:$0xff]
        %v457 = vld [vmem:[#allocation2 + $0x590] sm:$0xff]
        %v458 = vld [vmem:[#allocation2 + $0x598] sm:$0xff]
        %v459 = vld [vmem:[#allocation2 + $0x5a0] sm:$0xff]
        %v460 = vld [vmem:[#allocation2 + $0x5a8] sm:$0xff]
        %v461 = vld [vmem:[#allocation2 + $0x5b0] sm:$0xff]
        %v462 = vld [vmem:[#allocation2 + $0x5b8] sm:$0xff]
        %v463 = vld [vmem:[#allocation2 + $0x5c0] sm:$0xff]
        %v464 = vld [vmem:[#allocation2 + $0x5c8] sm:$0xff]
        %v465 = vld [vmem:[#allocation2 + $0x5d0] sm:$0xff]
        %v466 = vld [vmem:[#allocation2 + $0x5d8] sm:$0xff]
        %v467 = vld [vmem:[#allocation2 + $0x5e0] sm:$0xff]
        %v468 = vld [vmem:[#allocation2 + $0x5e8] sm:$0xff]
        %v469 = vld [vmem:[#allocation2 + $0x5f0] sm:$0xff]
        %v470 = vld [vmem:[#allocation2 + $0x5f8] sm:$0xff]
        %v471 = vld [vmem:[#allocation2 + $0x600] sm:$0xff]
        %v472 = vld [vmem:[#allocation2 + $0x608] sm:$0xff]
        %v473 = vld [vmem:[#allocation2 + $0x610] sm:$0xff]
        %v474 = vld [vmem:[#allocation2 + $0x618] sm:$0xff]
        %v475 = vld [vmem:[%s2] sm:$0xf]
        %v477 = vperm.slane %v475, 0
        %v478 = vperm.slane %v475, 1
        %v479 = vperm.slane %v475, 2
        %v480 = vperm.slane %v475, 3
        %v517 = vunpack.c.l.b16 %v247
        %v518 = vunpack.c.h.b16 %v247
        %v519 = vunpack.c.l.b16 %v248
        %v520 = vunpack.c.h.b16 %v248
        %v521 = vunpack.c.l.b16 %v249
        %v522 = vunpack.c.h.b16 %v249
        %v523 = vunpack.c.l.b16 %v250
        %v524 = vunpack.c.l.b16 %v251
        %v525 = vunpack.c.h.b16 %v251
        %v526 = vunpack.c.l.b16 %v252
        %v527 = vunpack.c.h.b16 %v252
        %v528 = vunpack.c.l.b16 %v253
        %v529 = vunpack.c.h.b16 %v253
        %v530 = vunpack.c.l.b16 %v254
        %v531 = vunpack.c.l.b16 %v255
        %v532 = vunpack.c.h.b16 %v255
        %v533 = vunpack.c.l.b16 %v256
        %v534 = vunpack.c.h.b16 %v256
        %v535 = vunpack.c.l.b16 %v257
        %v536 = vunpack.c.h.b16 %v257
        %v537 = vunpack.c.l.b16 %v258
        %v538 = vunpack.c.l.b16 %v259
        %v539 = vunpack.c.h.b16 %v259
        %v540 = vunpack.c.l.b16 %v260
        %v541 = vunpack.c.h.b16 %v260
        %v542 = vunpack.c.l.b16 %v261
        %v543 = vunpack.c.h.b16 %v261
        %v544 = vunpack.c.l.b16 %v262
        %v545 = vunpack.c.l.b16 %v263
        %v546 = vunpack.c.h.b16 %v263
        %v547 = vunpack.c.l.b16 %v264
        %v548 = vunpack.c.h.b16 %v264
        %v549 = vunpack.c.l.b16 %v265
        %v550 = vunpack.c.h.b16 %v265
        %v551 = vunpack.c.l.b16 %v266
        %v552 = vunpack.c.l.b16 %v267
        %v553 = vunpack.c.h.b16 %v267
        %v554 = vunpack.c.l.b16 %v268
        %v555 = vunpack.c.h.b16 %v268
        %v556 = vunpack.c.l.b16 %v269
        %v557 = vunpack.c.h.b16 %v269
        %v558 = vunpack.c.l.b16 %v270
        %v559 = vunpack.c.l.b16 %v271
        %v560 = vunpack.c.h.b16 %v271
        %v561 = vunpack.c.l.b16 %v272
        %v562 = vunpack.c.h.b16 %v272
        %v563 = vunpack.c.l.b16 %v273
        %v564 = vunpack.c.h.b16 %v273
        %v565 = vunpack.c.l.b16 %v274
        %v566 = vunpack.c.l.b16 %v275
        %v567 = vunpack.c.h.b16 %v275
        %v568 = vunpack.c.l.b16 %v276
        %v569 = vunpack.c.h.b16 %v276
        %v570 = vunpack.c.l.b16 %v277
        %v571 = vunpack.c.h.b16 %v277
        %v572 = vunpack.c.l.b16 %v278
        %v573 = vpack.c.b16 %v524, %v517
        %v574 = vpack.c.b16 %v525, %v518
        %v575 = vpack.c.b16 %v526, %v519
        %v576 = vpack.c.b16 %v527, %v520
        %v577 = vpack.c.b16 %v528, %v521
        %v578 = vpack.c.b16 %v529, %v522
        %v579 = vpack.c.b16 %v530, %v523
        %v580 = vpack.c.b16 %v538, %v531
        %v581 = vpack.c.b16 %v539, %v532
        %v582 = vpack.c.b16 %v540, %v533
        %v583 = vpack.c.b16 %v541, %v534
        %v584 = vpack.c.b16 %v542, %v535
        %v585 = vpack.c.b16 %v543, %v536
        %v586 = vpack.c.b16 %v544, %v537
        %v587 = vpack.c.b16 %v552, %v545
        %v588 = vpack.c.b16 %v553, %v546
        %v589 = vpack.c.b16 %v554, %v547
        %v590 = vpack.c.b16 %v555, %v548
        %v591 = vpack.c.b16 %v556, %v549
        %v592 = vpack.c.b16 %v557, %v550
        %v593 = vpack.c.b16 %v558, %v551
        %v594 = vpack.c.b16 %v566, %v559
        %v595 = vpack.c.b16 %v567, %v560
        %v596 = vpack.c.b16 %v568, %v561
        %v597 = vpack.c.b16 %v569, %v562
        %v598 = vpack.c.b16 %v570, %v563
        %v599 = vpack.c.b16 %v571, %v564
        %v600 = vpack.c.b16 %v572, %v565
        %v821 = vunpack.c.l.b16 %v279
        %v822 = vunpack.c.h.b16 %v279
        %v823 = vunpack.c.l.b16 %v280
        %v824 = vunpack.c.h.b16 %v280
        %v825 = vunpack.c.l.b16 %v281
        %v826 = vunpack.c.h.b16 %v281
        %v827 = vunpack.c.l.b16 %v282
        %v828 = vunpack.c.h.b16 %v282
        %v829 = vunpack.c.l.b16 %v283
        %v830 = vunpack.c.h.b16 %v283
        %v831 = vunpack.c.l.b16 %v284
        %v832 = vunpack.c.h.b16 %v284
        %v833 = vunpack.c.l.b16 %v285
        %v834 = vunpack.c.h.b16 %v285
        %v835 = vunpack.c.l.b16 %v286
        %v836 = vunpack.c.h.b16 %v286
        %v837 = vunpack.c.l.b16 %v287
        %v838 = vunpack.c.h.b16 %v287
        %v839 = vunpack.c.l.b16 %v288
        %v840 = vunpack.c.h.b16 %v288
        %v841 = vunpack.c.l.b16 %v289
        %v842 = vunpack.c.h.b16 %v289
        %v843 = vunpack.c.l.b16 %v290
        %v844 = vunpack.c.h.b16 %v290
        %v845 = vunpack.c.l.b16 %v291
        %v846 = vunpack.c.h.b16 %v291
        %v847 = vunpack.c.l.b16 %v292
        %v848 = vunpack.c.h.b16 %v292
        %v849 = vunpack.c.l.b16 %v293
        %v850 = vunpack.c.h.b16 %v293
        %v851 = vunpack.c.l.b16 %v294
        %v852 = vunpack.c.h.b16 %v294
        %v853 = vunpack.c.l.b16 %v295
        %v854 = vunpack.c.h.b16 %v295
        %v855 = vunpack.c.l.b16 %v296
        %v856 = vunpack.c.h.b16 %v296
        %v857 = vunpack.c.l.b16 %v297
        %v858 = vunpack.c.h.b16 %v297
        %v859 = vunpack.c.l.b16 %v298
        %v860 = vunpack.c.h.b16 %v298
        %v861 = vunpack.c.l.b16 %v299
        %v862 = vunpack.c.h.b16 %v299
        %v863 = vunpack.c.l.b16 %v300
        %v864 = vunpack.c.h.b16 %v300
        %v865 = vunpack.c.l.b16 %v301
        %v866 = vunpack.c.h.b16 %v301
        %v867 = vunpack.c.l.b16 %v302
        %v868 = vunpack.c.h.b16 %v302
        %v869 = vunpack.c.l.b16 %v303
        %v870 = vunpack.c.h.b16 %v303
        %v871 = vunpack.c.l.b16 %v304
        %v872 = vunpack.c.h.b16 %v304
        %v873 = vunpack.c.l.b16 %v305
        %v874 = vunpack.c.h.b16 %v305
        %v875 = vunpack.c.l.b16 %v306
        %v876 = vunpack.c.h.b16 %v306
        %v877 = vunpack.c.l.b16 %v307
        %v878 = vunpack.c.h.b16 %v307
        %v879 = vunpack.c.l.b16 %v308
        %v880 = vunpack.c.h.b16 %v308
        %v881 = vunpack.c.l.b16 %v309
        %v882 = vunpack.c.h.b16 %v309
        %v883 = vunpack.c.l.b16 %v310
        %v884 = vunpack.c.h.b16 %v310
        %v885 = vunpack.c.l.b16 %v311
        %v886 = vunpack.c.h.b16 %v311
        %v887 = vunpack.c.l.b16 %v312
        %v888 = vunpack.c.h.b16 %v312
        %v889 = vunpack.c.l.b16 %v313
        %v890 = vunpack.c.h.b16 %v313
        %v891 = vunpack.c.l.b16 %v314
        %v892 = vunpack.c.h.b16 %v314
        %v893 = vunpack.c.l.b16 %v315
        %v894 = vunpack.c.h.b16 %v315
        %v895 = vunpack.c.l.b16 %v316
        %v896 = vunpack.c.h.b16 %v316
        %v897 = vunpack.c.l.b16 %v317
        %v898 = vunpack.c.h.b16 %v317
        %v899 = vunpack.c.l.b16 %v318
        %v900 = vunpack.c.h.b16 %v318
        %v901 = vunpack.c.l.b16 %v319
        %v902 = vunpack.c.h.b16 %v319
        %v903 = vunpack.c.l.b16 %v320
        %v904 = vunpack.c.h.b16 %v320
        %v905 = vunpack.c.l.b16 %v321
        %v906 = vunpack.c.h.b16 %v321
        %v907 = vunpack.c.l.b16 %v322
        %v908 = vunpack.c.h.b16 %v322
        %v909 = vunpack.c.l.b16 %v323
        %v910 = vunpack.c.h.b16 %v323
        %v911 = vunpack.c.l.b16 %v324
        %v912 = vunpack.c.h.b16 %v324
        %v913 = vunpack.c.l.b16 %v325
        %v914 = vunpack.c.h.b16 %v325
        %v915 = vunpack.c.l.b16 %v326
        %v916 = vunpack.c.h.b16 %v326
        %v917 = vunpack.c.l.b16 %v327
        %v918 = vunpack.c.h.b16 %v327
        %v919 = vunpack.c.l.b16 %v328
        %v920 = vunpack.c.h.b16 %v328
        %v921 = vunpack.c.l.b16 %v329
        %v922 = vunpack.c.h.b16 %v329
        %v923 = vunpack.c.l.b16 %v330
        %v924 = vunpack.c.h.b16 %v330
        %v925 = vunpack.c.l.b16 %v331
        %v926 = vunpack.c.h.b16 %v331
        %v927 = vunpack.c.l.b16 %v332
        %v928 = vunpack.c.h.b16 %v332
        %v929 = vunpack.c.l.b16 %v333
        %v930 = vunpack.c.h.b16 %v333
        %v931 = vunpack.c.l.b16 %v334
        %v932 = vunpack.c.h.b16 %v334
        %v933 = vunpack.c.l.b16 %v335
        %v934 = vunpack.c.h.b16 %v335
        %v935 = vunpack.c.l.b16 %v336
        %v936 = vunpack.c.h.b16 %v336
        %v937 = vunpack.c.l.b16 %v337
        %v938 = vunpack.c.h.b16 %v337
        %v939 = vunpack.c.l.b16 %v338
        %v940 = vunpack.c.h.b16 %v338
        %v941 = vunpack.c.l.b16 %v339
        %v942 = vunpack.c.h.b16 %v339
        %v943 = vunpack.c.l.b16 %v340
        %v944 = vunpack.c.h.b16 %v340
        %v945 = vunpack.c.l.b16 %v341
        %v946 = vunpack.c.h.b16 %v341
        %v947 = vunpack.c.l.b16 %v342
        %v948 = vunpack.c.h.b16 %v342
        %v949 = vunpack.c.l.b16 %v343
        %v950 = vunpack.c.h.b16 %v343
        %v951 = vunpack.c.l.b16 %v344
        %v952 = vunpack.c.h.b16 %v344
        %v953 = vunpack.c.l.b16 %v345
        %v954 = vunpack.c.h.b16 %v345
        %v955 = vunpack.c.l.b16 %v346
        %v956 = vunpack.c.h.b16 %v346
        %v957 = vunpack.c.l.b16 %v347
        %v958 = vunpack.c.h.b16 %v347
        %v959 = vunpack.c.l.b16 %v348
        %v960 = vunpack.c.h.b16 %v348
        %v961 = vunpack.c.l.b16 %v349
        %v962 = vunpack.c.h.b16 %v349
        %v963 = vunpack.c.l.b16 %v350
        %v964 = vunpack.c.h.b16 %v350
        %v965 = vunpack.c.l.b16 %v351
        %v966 = vunpack.c.h.b16 %v351
        %v967 = vunpack.c.l.b16 %v352
        %v968 = vunpack.c.h.b16 %v352
        %v969 = vunpack.c.l.b16 %v353
        %v970 = vunpack.c.h.b16 %v353
        %v971 = vunpack.c.l.b16 %v354
        %v972 = vunpack.c.h.b16 %v354
        %v973 = vunpack.c.l.b16 %v355
        %v974 = vunpack.c.h.b16 %v355
        %v975 = vunpack.c.l.b16 %v356
        %v976 = vunpack.c.h.b16 %v356
        %v977 = vunpack.c.l.b16 %v357
        %v978 = vunpack.c.h.b16 %v357
        %v979 = vunpack.c.l.b16 %v358
        %v980 = vunpack.c.h.b16 %v358
        %v981 = vunpack.c.l.b16 %v359
        %v982 = vunpack.c.h.b16 %v359
        %v983 = vunpack.c.l.b16 %v360
        %v984 = vunpack.c.h.b16 %v360
        %v985 = vunpack.c.l.b16 %v361
        %v986 = vunpack.c.h.b16 %v361
        %v987 = vunpack.c.l.b16 %v362
        %v988 = vunpack.c.h.b16 %v362
        %v989 = vunpack.c.l.b16 %v363
        %v990 = vunpack.c.h.b16 %v363
        %v991 = vunpack.c.l.b16 %v364
        %v992 = vunpack.c.h.b16 %v364
        %v993 = vunpack.c.l.b16 %v365
        %v994 = vunpack.c.h.b16 %v365
        %v995 = vunpack.c.l.b16 %v366
        %v996 = vunpack.c.h.b16 %v366
        %v997 = vunpack.c.l.b16 %v367
        %v998 = vunpack.c.h.b16 %v367
        %v999 = vunpack.c.l.b16 %v368
        %v1000 = vunpack.c.h.b16 %v368
        %v1001 = vunpack.c.l.b16 %v369
        %v1002 = vunpack.c.h.b16 %v369
        %v1003 = vunpack.c.l.b16 %v370
        %v1004 = vunpack.c.h.b16 %v370
        %v1005 = vunpack.c.l.b16 %v371
        %v1006 = vunpack.c.h.b16 %v371
        %v1007 = vunpack.c.l.b16 %v372
        %v1008 = vunpack.c.h.b16 %v372
        %v1009 = vunpack.c.l.b16 %v373
        %v1010 = vunpack.c.h.b16 %v373
        %v1011 = vunpack.c.l.b16 %v374
        %v1012 = vunpack.c.h.b16 %v374
        %v1013 = vunpack.c.l.b16 %v375
        %v1014 = vunpack.c.h.b16 %v375
        %v1015 = vunpack.c.l.b16 %v376
        %v1016 = vunpack.c.h.b16 %v376
        %v1017 = vunpack.c.l.b16 %v377
        %v1018 = vunpack.c.h.b16 %v377
        %v1019 = vunpack.c.l.b16 %v378
        %v1020 = vunpack.c.h.b16 %v378
        %v1021 = vunpack.c.l.b16 %v379
        %v1022 = vunpack.c.h.b16 %v379
        %v1023 = vunpack.c.l.b16 %v380
        %v1024 = vunpack.c.h.b16 %v380
        %v1025 = vunpack.c.l.b16 %v381
        %v1026 = vunpack.c.h.b16 %v381
        %v1027 = vunpack.c.l.b16 %v382
        %v1028 = vunpack.c.h.b16 %v382
        %v1029 = vunpack.c.l.b16 %v383
        %v1030 = vunpack.c.h.b16 %v383
        %v1031 = vunpack.c.l.b16 %v384
        %v1032 = vunpack.c.h.b16 %v384
        %v1033 = vunpack.c.l.b16 %v385
        %v1034 = vunpack.c.h.b16 %v385
        %v1035 = vunpack.c.l.b16 %v386
        %v1036 = vunpack.c.h.b16 %v386
        %v1037 = vunpack.c.l.b16 %v387
        %v1038 = vunpack.c.h.b16 %v387
        %v1039 = vunpack.c.l.b16 %v388
        %v1040 = vunpack.c.h.b16 %v388
        %v1041 = vunpack.c.l.b16 %v389
        %v1042 = vunpack.c.h.b16 %v389
        %v1043 = vunpack.c.l.b16 %v390
        %v1044 = vunpack.c.h.b16 %v390
        %v1045 = vunpack.c.l.b16 %v391
        %v1046 = vunpack.c.h.b16 %v391
        %v1047 = vunpack.c.l.b16 %v392
        %v1048 = vunpack.c.h.b16 %v392
        %v1049 = vunpack.c.l.b16 %v393
        %v1050 = vunpack.c.h.b16 %v393
        %v1051 = vunpack.c.l.b16 %v394
        %v1052 = vunpack.c.h.b16 %v394
        %v1053 = vunpack.c.l.b16 %v395
        %v1054 = vunpack.c.h.b16 %v395
        %v1055 = vunpack.c.l.b16 %v396
        %v1056 = vunpack.c.h.b16 %v396
        %v1057 = vunpack.c.l.b16 %v397
        %v1058 = vunpack.c.h.b16 %v397
        %v1059 = vunpack.c.l.b16 %v398
        %v1060 = vunpack.c.h.b16 %v398
        %v1061 = vunpack.c.l.b16 %v399
        %v1062 = vunpack.c.h.b16 %v399
        %v1063 = vunpack.c.l.b16 %v400
        %v1064 = vunpack.c.h.b16 %v400
        %v1065 = vunpack.c.l.b16 %v401
        %v1066 = vunpack.c.h.b16 %v401
        %v1067 = vunpack.c.l.b16 %v402
        %v1068 = vunpack.c.h.b16 %v402
        %v1069 = vunpack.c.l.b16 %v403
        %v1070 = vunpack.c.h.b16 %v403
        %v1071 = vunpack.c.l.b16 %v404
        %v1072 = vunpack.c.h.b16 %v404
        %v1073 = vunpack.c.l.b16 %v405
        %v1074 = vunpack.c.h.b16 %v405
        %v1075 = vunpack.c.l.b16 %v406
        %v1076 = vunpack.c.h.b16 %v406
        %v1077 = vunpack.c.l.b16 %v407
        %v1078 = vunpack.c.h.b16 %v407
        %v1079 = vunpack.c.l.b16 %v408
        %v1080 = vunpack.c.h.b16 %v408
        %v1081 = vunpack.c.l.b16 %v409
        %v1082 = vunpack.c.h.b16 %v409
        %v1083 = vunpack.c.l.b16 %v410
        %v1084 = vunpack.c.h.b16 %v410
        %v1085 = vunpack.c.l.b16 %v411
        %v1086 = vunpack.c.h.b16 %v411
        %v1087 = vunpack.c.l.b16 %v412
        %v1088 = vunpack.c.h.b16 %v412
        %v1089 = vunpack.c.l.b16 %v413
        %v1090 = vunpack.c.h.b16 %v413
        %v1091 = vunpack.c.l.b16 %v414
        %v1092 = vunpack.c.h.b16 %v414
        %v1093 = vunpack.c.l.b16 %v415
        %v1094 = vunpack.c.h.b16 %v415
        %v1095 = vunpack.c.l.b16 %v416
        %v1096 = vunpack.c.h.b16 %v416
        %v1097 = vunpack.c.l.b16 %v417
        %v1098 = vunpack.c.h.b16 %v417
        %v1099 = vunpack.c.l.b16 %v418
        %v1100 = vunpack.c.h.b16 %v418
        %v1101 = vunpack.c.l.b16 %v419
        %v1102 = vunpack.c.h.b16 %v419
        %v1103 = vunpack.c.l.b16 %v420
        %v1104 = vunpack.c.h.b16 %v420
        %v1105 = vunpack.c.l.b16 %v421
        %v1106 = vunpack.c.h.b16 %v421
        %v1107 = vunpack.c.l.b16 %v422
        %v1108 = vunpack.c.h.b16 %v422
        %v1109 = vunpack.c.l.b16 %v423
        %v1110 = vunpack.c.h.b16 %v423
        %v1111 = vunpack.c.l.b16 %v424
        %v1112 = vunpack.c.h.b16 %v424
        %v1113 = vunpack.c.l.b16 %v425
        %v1114 = vunpack.c.h.b16 %v425
        %v1115 = vunpack.c.l.b16 %v426
        %v1116 = vunpack.c.h.b16 %v426
        %v1117 = vunpack.c.l.b16 %v427
        %v1118 = vunpack.c.h.b16 %v427
        %v1119 = vunpack.c.l.b16 %v428
        %v1120 = vunpack.c.h.b16 %v428
        %v1121 = vunpack.c.l.b16 %v429
        %v1122 = vunpack.c.h.b16 %v429
        %v1123 = vunpack.c.l.b16 %v430
        %v1124 = vunpack.c.h.b16 %v430
        %v1125 = vunpack.c.l.b16 %v431
        %v1126 = vunpack.c.h.b16 %v431
        %v1127 = vunpack.c.l.b16 %v432
        %v1128 = vunpack.c.h.b16 %v432
        %v1129 = vunpack.c.l.b16 %v433
        %v1130 = vunpack.c.h.b16 %v433
        %v1131 = vunpack.c.l.b16 %v434
        %v1132 = vunpack.c.h.b16 %v434
        %v1133 = vunpack.c.l.b16 %v435
        %v1134 = vunpack.c.h.b16 %v435
        %v1135 = vunpack.c.l.b16 %v436
        %v1136 = vunpack.c.h.b16 %v436
        %v1137 = vunpack.c.l.b16 %v437
        %v1138 = vunpack.c.h.b16 %v437
        %v1139 = vunpack.c.l.b16 %v438
        %v1140 = vunpack.c.h.b16 %v438
        %v1141 = vunpack.c.l.b16 %v439
        %v1142 = vunpack.c.h.b16 %v439
        %v1143 = vunpack.c.l.b16 %v440
        %v1144 = vunpack.c.h.b16 %v440
        %v1145 = vunpack.c.l.b16 %v441
        %v1146 = vunpack.c.h.b16 %v441
        %v1147 = vunpack.c.l.b16 %v442
        %v1148 = vunpack.c.h.b16 %v442
        %v1149 = vunpack.c.l.b16 %v443
        %v1150 = vunpack.c.h.b16 %v443
        %v1151 = vunpack.c.l.b16 %v444
        %v1152 = vunpack.c.h.b16 %v444
        %v1153 = vunpack.c.l.b16 %v445
        %v1154 = vunpack.c.h.b16 %v445
        %v1155 = vunpack.c.l.b16 %v446
        %v1156 = vunpack.c.h.b16 %v446
        %v1157 = vunpack.c.l.b16 %v447
        %v1158 = vunpack.c.h.b16 %v447
        %v1159 = vunpack.c.l.b16 %v448
        %v1160 = vunpack.c.h.b16 %v448
        %v1161 = vunpack.c.l.b16 %v449
        %v1162 = vunpack.c.h.b16 %v449
        %v1163 = vunpack.c.l.b16 %v450
        %v1164 = vunpack.c.h.b16 %v450
        %v1165 = vunpack.c.l.b16 %v451
        %v1166 = vunpack.c.h.b16 %v451
        %v1167 = vunpack.c.l.b16 %v452
        %v1168 = vunpack.c.h.b16 %v452
        %v1169 = vunpack.c.l.b16 %v453
        %v1170 = vunpack.c.h.b16 %v453
        %v1171 = vunpack.c.l.b16 %v454
        %v1172 = vunpack.c.h.b16 %v454
        %v1173 = vunpack.c.l.b16 %v455
        %v1174 = vunpack.c.h.b16 %v455
        %v1175 = vunpack.c.l.b16 %v456
        %v1176 = vunpack.c.h.b16 %v456
        %v1177 = vunpack.c.l.b16 %v457
        %v1178 = vunpack.c.h.b16 %v457
        %v1179 = vunpack.c.l.b16 %v458
        %v1180 = vunpack.c.h.b16 %v458
        %v1181 = vunpack.c.l.b16 %v459
        %v1182 = vunpack.c.h.b16 %v459
        %v1183 = vunpack.c.l.b16 %v460
        %v1184 = vunpack.c.h.b16 %v460
        %v1185 = vunpack.c.l.b16 %v461
        %v1186 = vunpack.c.h.b16 %v461
        %v1187 = vunpack.c.l.b16 %v462
        %v1188 = vunpack.c.h.b16 %v462
        %v1189 = vunpack.c.l.b16 %v463
        %v1190 = vunpack.c.h.b16 %v463
        %v1191 = vunpack.c.l.b16 %v464
        %v1192 = vunpack.c.h.b16 %v464
        %v1193 = vunpack.c.l.b16 %v465
        %v1194 = vunpack.c.h.b16 %v465
        %v1195 = vunpack.c.l.b16 %v466
        %v1196 = vunpack.c.h.b16 %v466
        %v1197 = vunpack.c.l.b16 %v467
        %v1198 = vunpack.c.h.b16 %v467
        %v1199 = vunpack.c.l.b16 %v468
        %v1200 = vunpack.c.h.b16 %v468
        %v1201 = vunpack.c.l.b16 %v469
        %v1202 = vunpack.c.h.b16 %v469
        %v1203 = vunpack.c.l.b16 %v470
        %v1204 = vunpack.c.h.b16 %v470
        %v1205 = vunpack.c.l.b16 %v471
        %v1206 = vunpack.c.h.b16 %v471
        %v1207 = vunpack.c.l.b16 %v472
        %v1208 = vunpack.c.h.b16 %v472
        %v1209 = vunpack.c.l.b16 %v473
        %v1210 = vunpack.c.h.b16 %v473
        %v1211 = vunpack.c.l.b16 %v474
        %v1212 = vunpack.c.h.b16 %v474
        %v1213 = vpack.c.b16 %v825, %v821
        %v1214 = vpack.c.b16 %v826, %v822
        %v1215 = vpack.c.b16 %v827, %v823
        %v1216 = vpack.c.b16 %v828, %v824
        %v1217 = vpack.c.b16 %v833, %v829
        %v1218 = vpack.c.b16 %v834, %v830
        %v1219 = vpack.c.b16 %v835, %v831
        %v1220 = vpack.c.b16 %v836, %v832
        %v1221 = vpack.c.b16 %v841, %v837
        %v1222 = vpack.c.b16 %v842, %v838
        %v1223 = vpack.c.b16 %v843, %v839
        %v1224 = vpack.c.b16 %v844, %v840
        %v1225 = vpack.c.b16 %v849, %v845
        %v1226 = vpack.c.b16 %v850, %v846
        %v1227 = vpack.c.b16 %v851, %v847
        %v1228 = vpack.c.b16 %v852, %v848
        %v1229 = vpack.c.b16 %v857, %v853
        %v1230 = vpack.c.b16 %v858, %v854
        %v1231 = vpack.c.b16 %v859, %v855
        %v1232 = vpack.c.b16 %v860, %v856
        %v1233 = vpack.c.b16 %v865, %v861
        %v1234 = vpack.c.b16 %v866, %v862
        %v1235 = vpack.c.b16 %v867, %v863
        %v1236 = vpack.c.b16 %v868, %v864
        %v1237 = vpack.c.b16 %v873, %v869
        %v1238 = vpack.c.b16 %v874, %v870
        %v1239 = vpack.c.b16 %v875, %v871
        %v1240 = vpack.c.b16 %v876, %v872
        %v1241 = vpack.c.b16 %v881, %v877
        %v1242 = vpack.c.b16 %v882, %v878
        %v1243 = vpack.c.b16 %v883, %v879
        %v1244 = vpack.c.b16 %v884, %v880
        %v1245 = vpack.c.b16 %v889, %v885
        %v1246 = vpack.c.b16 %v890, %v886
        %v1247 = vpack.c.b16 %v891, %v887
        %v1248 = vpack.c.b16 %v892, %v888
        %v1249 = vpack.c.b16 %v897, %v893
        %v1250 = vpack.c.b16 %v898, %v894
        %v1251 = vpack.c.b16 %v899, %v895
        %v1252 = vpack.c.b16 %v900, %v896
        %v1253 = vpack.c.b16 %v905, %v901
        %v1254 = vpack.c.b16 %v906, %v902
        %v1255 = vpack.c.b16 %v907, %v903
        %v1256 = vpack.c.b16 %v908, %v904
        %v1257 = vpack.c.b16 %v913, %v909
        %v1258 = vpack.c.b16 %v914, %v910
        %v1259 = vpack.c.b16 %v915, %v911
        %v1260 = vpack.c.b16 %v916, %v912
        %v1261 = vpack.c.b16 %v921, %v917
        %v1262 = vpack.c.b16 %v922, %v918
        %v1263 = vpack.c.b16 %v923, %v919
        %v1264 = vpack.c.b16 %v924, %v920
        %v1265 = vpack.c.b16 %v929, %v925
        %v1266 = vpack.c.b16 %v930, %v926
        %v1267 = vpack.c.b16 %v931, %v927
        %v1268 = vpack.c.b16 %v932, %v928
        %v1269 = vpack.c.b16 %v937, %v933
        %v1270 = vpack.c.b16 %v938, %v934
        %v1271 = vpack.c.b16 %v939, %v935
        %v1272 = vpack.c.b16 %v940, %v936
        %v1273 = vpack.c.b16 %v945, %v941
        %v1274 = vpack.c.b16 %v946, %v942
        %v1275 = vpack.c.b16 %v947, %v943
        %v1276 = vpack.c.b16 %v948, %v944
        %v1277 = vpack.c.b16 %v953, %v949
        %v1278 = vpack.c.b16 %v954, %v950
        %v1279 = vpack.c.b16 %v955, %v951
        %v1280 = vpack.c.b16 %v956, %v952
        %v1281 = vpack.c.b16 %v961, %v957
        %v1282 = vpack.c.b16 %v962, %v958
        %v1283 = vpack.c.b16 %v963, %v959
        %v1284 = vpack.c.b16 %v964, %v960
        %v1285 = vpack.c.b16 %v969, %v965
        %v1286 = vpack.c.b16 %v970, %v966
        %v1287 = vpack.c.b16 %v971, %v967
        %v1288 = vpack.c.b16 %v972, %v968
        %v1289 = vpack.c.b16 %v977, %v973
        %v1290 = vpack.c.b16 %v978, %v974
        %v1291 = vpack.c.b16 %v979, %v975
        %v1292 = vpack.c.b16 %v980, %v976
        %v1293 = vpack.c.b16 %v985, %v981
        %v1294 = vpack.c.b16 %v986, %v982
        %v1295 = vpack.c.b16 %v987, %v983
        %v1296 = vpack.c.b16 %v988, %v984
        %v1297 = vpack.c.b16 %v993, %v989
        %v1298 = vpack.c.b16 %v994, %v990
        %v1299 = vpack.c.b16 %v995, %v991
        %v1300 = vpack.c.b16 %v996, %v992
        %v1301 = vpack.c.b16 %v1001, %v997
        %v1302 = vpack.c.b16 %v1002, %v998
        %v1303 = vpack.c.b16 %v1003, %v999
        %v1304 = vpack.c.b16 %v1004, %v1000
        %v1305 = vpack.c.b16 %v1009, %v1005
        %v1306 = vpack.c.b16 %v1010, %v1006
        %v1307 = vpack.c.b16 %v1011, %v1007
        %v1308 = vpack.c.b16 %v1012, %v1008
        %v1309 = vpack.c.b16 %v1017, %v1013
        %v1310 = vpack.c.b16 %v1018, %v1014
        %v1311 = vpack.c.b16 %v1019, %v1015
        %v1312 = vpack.c.b16 %v1020, %v1016
        %v1313 = vpack.c.b16 %v1025, %v1021
        %v1314 = vpack.c.b16 %v1026, %v1022
        %v1315 = vpack.c.b16 %v1027, %v1023
        %v1316 = vpack.c.b16 %v1028, %v1024
        %v1317 = vpack.c.b16 %v1033, %v1029
        %v1318 = vpack.c.b16 %v1034, %v1030
        %v1319 = vpack.c.b16 %v1035, %v1031
        %v1320 = vpack.c.b16 %v1036, %v1032
        %v1321 = vpack.c.b16 %v1041, %v1037
        %v1322 = vpack.c.b16 %v1042, %v1038
        %v1323 = vpack.c.b16 %v1043, %v1039
        %v1324 = vpack.c.b16 %v1044, %v1040
        %v1325 = vpack.c.b16 %v1049, %v1045
        %v1326 = vpack.c.b16 %v1050, %v1046
        %v1327 = vpack.c.b16 %v1051, %v1047
        %v1328 = vpack.c.b16 %v1052, %v1048
        %v1329 = vpack.c.b16 %v1057, %v1053
        %v1330 = vpack.c.b16 %v1058, %v1054
        %v1331 = vpack.c.b16 %v1059, %v1055
        %v1332 = vpack.c.b16 %v1060, %v1056
        %v1333 = vpack.c.b16 %v1065, %v1061
        %v1334 = vpack.c.b16 %v1066, %v1062
        %v1335 = vpack.c.b16 %v1067, %v1063
        %v1336 = vpack.c.b16 %v1068, %v1064
        %v1337 = vpack.c.b16 %v1073, %v1069
        %v1338 = vpack.c.b16 %v1074, %v1070
        %v1339 = vpack.c.b16 %v1075, %v1071
        %v1340 = vpack.c.b16 %v1076, %v1072
        %v1341 = vpack.c.b16 %v1081, %v1077
        %v1342 = vpack.c.b16 %v1082, %v1078
        %v1343 = vpack.c.b16 %v1083, %v1079
        %v1344 = vpack.c.b16 %v1084, %v1080
        %v1345 = vpack.c.b16 %v1089, %v1085
        %v1346 = vpack.c.b16 %v1090, %v1086
        %v1347 = vpack.c.b16 %v1091, %v1087
        %v1348 = vpack.c.b16 %v1092, %v1088
        %v1349 = vpack.c.b16 %v1097, %v1093
        %v1350 = vpack.c.b16 %v1098, %v1094
        %v1351 = vpack.c.b16 %v1099, %v1095
        %v1352 = vpack.c.b16 %v1100, %v1096
        %v1353 = vpack.c.b16 %v1105, %v1101
        %v1354 = vpack.c.b16 %v1106, %v1102
        %v1355 = vpack.c.b16 %v1107, %v1103
        %v1356 = vpack.c.b16 %v1108, %v1104
        %v1357 = vpack.c.b16 %v1113, %v1109
        %v1358 = vpack.c.b16 %v1114, %v1110
        %v1359 = vpack.c.b16 %v1115, %v1111
        %v1360 = vpack.c.b16 %v1116, %v1112
        %v1361 = vpack.c.b16 %v1121, %v1117
        %v1362 = vpack.c.b16 %v1122, %v1118
        %v1363 = vpack.c.b16 %v1123, %v1119
        %v1364 = vpack.c.b16 %v1124, %v1120
        %v1365 = vpack.c.b16 %v1129, %v1125
        %v1366 = vpack.c.b16 %v1130, %v1126
        %v1367 = vpack.c.b16 %v1131, %v1127
        %v1368 = vpack.c.b16 %v1132, %v1128
        %v1369 = vpack.c.b16 %v1137, %v1133
        %v1370 = vpack.c.b16 %v1138, %v1134
        %v1371 = vpack.c.b16 %v1139, %v1135
        %v1372 = vpack.c.b16 %v1140, %v1136
        %v1373 = vpack.c.b16 %v1145, %v1141
        %v1374 = vpack.c.b16 %v1146, %v1142
        %v1375 = vpack.c.b16 %v1147, %v1143
        %v1376 = vpack.c.b16 %v1148, %v1144
        %v1377 = vpack.c.b16 %v1153, %v1149
        %v1378 = vpack.c.b16 %v1154, %v1150
        %v1379 = vpack.c.b16 %v1155, %v1151
        %v1380 = vpack.c.b16 %v1156, %v1152
        %v1381 = vpack.c.b16 %v1161, %v1157
        %v1382 = vpack.c.b16 %v1162, %v1158
        %v1383 = vpack.c.b16 %v1163, %v1159
        %v1384 = vpack.c.b16 %v1164, %v1160
        %v1385 = vpack.c.b16 %v1169, %v1165
        %v1386 = vpack.c.b16 %v1170, %v1166
        %v1387 = vpack.c.b16 %v1171, %v1167
        %v1388 = vpack.c.b16 %v1172, %v1168
        %v1389 = vpack.c.b16 %v1177, %v1173
        %v1390 = vpack.c.b16 %v1178, %v1174
        %v1391 = vpack.c.b16 %v1179, %v1175
        %v1392 = vpack.c.b16 %v1180, %v1176
        %v1393 = vpack.c.b16 %v1185, %v1181
        %v1394 = vpack.c.b16 %v1186, %v1182
        %v1395 = vpack.c.b16 %v1187, %v1183
        %v1396 = vpack.c.b16 %v1188, %v1184
        %v1397 = vpack.c.b16 %v1193, %v1189
        %v1398 = vpack.c.b16 %v1194, %v1190
        %v1399 = vpack.c.b16 %v1195, %v1191
        %v1400 = vpack.c.b16 %v1196, %v1192
        %v1401 = vpack.c.b16 %v1201, %v1197
        %v1402 = vpack.c.b16 %v1202, %v1198
        %v1403 = vpack.c.b16 %v1203, %v1199
        %v1404 = vpack.c.b16 %v1204, %v1200
        %v1405 = vpack.c.b16 %v1209, %v1205
        %v1406 = vpack.c.b16 %v1210, %v1206
        %v1407 = vpack.c.b16 %v1211, %v1207
        %v1408 = vpack.c.b16 %v1212, %v1208
        %vm1605 = vcmask 130048
        %v1607 = vsel %vm1605, %v579, 0
        %v1610 = vsel %vm1605, %v586, 0
        %v1613 = vsel %vm1605, %v593, 0
        %v1616 = vsel %vm1605, %v600, 0
        %1618 = vmatpush.bf16.msra.mxu0 %v1241
        %1619 = vmatpush.bf16.msra.mxu0 %v1237
        %1620 = vmatpush.bf16.msra.mxu0 %v1233
        %1621 = vmatpush.bf16.msra.mxu0 %v1229
        %1622 = vmatpush.bf16.msra.mxu0 %v1225
        %1623 = vmatpush.bf16.msra.mxu0 %v1221
        %1624 = vmatpush.bf16.msra.mxu0 %v1217
        %1625 = vmatpush.bf16.msra.mxu0 %v1213
        %1626 = vmatmul.bf16.gmra.mxu0 %v573
        %v1627 = vpop.f32.mrf.mxu0
        %v1628 = vadd.f32 %v477, %v1627
        %v1629 = vpop.f32.mrf.mxu0
        %v1630 = vadd.f32 %v477, %v1629
        %1631 = vmatmul.bf16.gmra.mxu0 %v580
        %v1632 = vpop.f32.mrf.mxu0
        %v1633 = vadd.f32 %v477, %v1632
        %v1634 = vpop.f32.mrf.mxu0
        %v1635 = vadd.f32 %v477, %v1634
        %1636 = vmatmul.bf16.gmra.mxu0 %v587
        %v1637 = vpop.f32.mrf.mxu0
        %v1638 = vadd.f32 %v477, %v1637
        %v1639 = vpop.f32.mrf.mxu0
        %v1640 = vadd.f32 %v477, %v1639
        %1641 = vmatmul.bf16.gmra.mxu0 %v594
        %v1642 = vpop.f32.mrf.mxu0
        %v1643 = vadd.f32 %v477, %v1642
        %v1644 = vpop.f32.mrf.mxu0
        %v1645 = vadd.f32 %v477, %v1644
        %1646 = vdwg.mxu0
        %1647 = vmatpush.bf16.msra.mxu0 %v1273
        %1648 = vmatpush.bf16.msra.mxu0 %v1269
        %1649 = vmatpush.bf16.msra.mxu0 %v1265
        %1650 = vmatpush.bf16.msra.mxu0 %v1261
        %1651 = vmatpush.bf16.msra.mxu0 %v1257
        %1652 = vmatpush.bf16.msra.mxu0 %v1253
        %1653 = vmatpush.bf16.msra.mxu0 %v1249
        %1654 = vmatpush.bf16.msra.mxu0 %v1245
        %1655 = vmatmul.bf16.gmra.mxu0 %v574
        %v1656 = vpop.f32.mrf.mxu0
        %v1657 = vadd.f32 %v1628, %v1656
        %v1658 = vpop.f32.mrf.mxu0
        %v1659 = vadd.f32 %v1630, %v1658
        %1660 = vmatmul.bf16.gmra.mxu0 %v581
        %v1661 = vpop.f32.mrf.mxu0
        %v1662 = vadd.f32 %v1633, %v1661
        %v1663 = vpop.f32.mrf.mxu0
        %v1664 = vadd.f32 %v1635, %v1663
        %1665 = vmatmul.bf16.gmra.mxu0 %v588
        %v1666 = vpop.f32.mrf.mxu0
        %v1667 = vadd.f32 %v1638, %v1666
        %v1668 = vpop.f32.mrf.mxu0
        %v1669 = vadd.f32 %v1640, %v1668
        %1670 = vmatmul.bf16.gmra.mxu0 %v595
        %v1671 = vpop.f32.mrf.mxu0
        %v1672 = vadd.f32 %v1643, %v1671
        %v1673 = vpop.f32.mrf.mxu0
        %v1674 = vadd.f32 %v1645, %v1673
        %1675 = vdwg.mxu0
        %1676 = vmatpush.bf16.msra.mxu0 %v1305
        %1677 = vmatpush.bf16.msra.mxu0 %v1301
        %1678 = vmatpush.bf16.msra.mxu0 %v1297
        %1679 = vmatpush.bf16.msra.mxu0 %v1293
        %1680 = vmatpush.bf16.msra.mxu0 %v1289
        %1681 = vmatpush.bf16.msra.mxu0 %v1285
        %1682 = vmatpush.bf16.msra.mxu0 %v1281
        %1683 = vmatpush.bf16.msra.mxu0 %v1277
        %1684 = vmatmul.bf16.gmra.mxu0 %v575
        %v1685 = vpop.f32.mrf.mxu0
        %v1686 = vadd.f32 %v1657, %v1685
        %v1687 = vpop.f32.mrf.mxu0
        %v1688 = vadd.f32 %v1659, %v1687
        %1689 = vmatmul.bf16.gmra.mxu0 %v582
        %v1690 = vpop.f32.mrf.mxu0
        %v1691 = vadd.f32 %v1662, %v1690
        %v1692 = vpop.f32.mrf.mxu0
        %v1693 = vadd.f32 %v1664, %v1692
        %1694 = vmatmul.bf16.gmra.mxu0 %v589
        %v1695 = vpop.f32.mrf.mxu0
        %v1696 = vadd.f32 %v1667, %v1695
        %v1697 = vpop.f32.mrf.mxu0
        %v1698 = vadd.f32 %v1669, %v1697
        %1699 = vmatmul.bf16.gmra.mxu0 %v596
        %v1700 = vpop.f32.mrf.mxu0
        %v1701 = vadd.f32 %v1672, %v1700
        %v1702 = vpop.f32.mrf.mxu0
        %v1703 = vadd.f32 %v1674, %v1702
        %1704 = vdwg.mxu0
        %1705 = vmatpush.bf16.msra.mxu0 %v1337
        %1706 = vmatpush.bf16.msra.mxu0 %v1333
        %1707 = vmatpush.bf16.msra.mxu0 %v1329
        %1708 = vmatpush.bf16.msra.mxu0 %v1325
        %1709 = vmatpush.bf16.msra.mxu0 %v1321
        %1710 = vmatpush.bf16.msra.mxu0 %v1317
        %1711 = vmatpush.bf16.msra.mxu0 %v1313
        %1712 = vmatpush.bf16.msra.mxu0 %v1309
        %1713 = vmatmul.bf16.gmra.mxu0 %v576
        %v1714 = vpop.f32.mrf.mxu0
        %v1715 = vadd.f32 %v1686, %v1714
        %v1716 = vpop.f32.mrf.mxu0
        %v1717 = vadd.f32 %v1688, %v1716
        %1718 = vmatmul.bf16.gmra.mxu0 %v583
        %v1719 = vpop.f32.mrf.mxu0
        %v1720 = vadd.f32 %v1691, %v1719
        %v1721 = vpop.f32.mrf.mxu0
        %v1722 = vadd.f32 %v1693, %v1721
        %1723 = vmatmul.bf16.gmra.mxu0 %v590
        %v1724 = vpop.f32.mrf.mxu0
        %v1725 = vadd.f32 %v1696, %v1724
        %v1726 = vpop.f32.mrf.mxu0
        %v1727 = vadd.f32 %v1698, %v1726
        %1728 = vmatmul.bf16.gmra.mxu0 %v597
        %v1729 = vpop.f32.mrf.mxu0
        %v1730 = vadd.f32 %v1701, %v1729
        %v1731 = vpop.f32.mrf.mxu0
        %v1732 = vadd.f32 %v1703, %v1731
        %1733 = vdwg.mxu0
        %1734 = vmatpush.bf16.msra.mxu0 %v1369
        %1735 = vmatpush.bf16.msra.mxu0 %v1365
        %1736 = vmatpush.bf16.msra.mxu0 %v1361
        %1737 = vmatpush.bf16.msra.mxu0 %v1357
        %1738 = vmatpush.bf16.msra.mxu0 %v1353
        %1739 = vmatpush.bf16.msra.mxu0 %v1349
        %1740 = vmatpush.bf16.msra.mxu0 %v1345
        %1741 = vmatpush.bf16.msra.mxu0 %v1341
        %1742 = vmatmul.bf16.gmra.mxu0 %v577
        %v1743 = vpop.f32.mrf.mxu0
        %v1744 = vadd.f32 %v1715, %v1743
        %v1745 = vpop.f32.mrf.mxu0
        %v1746 = vadd.f32 %v1717, %v1745
        %1747 = vmatmul.bf16.gmra.mxu0 %v584
        %v1748 = vpop.f32.mrf.mxu0
        %v1749 = vadd.f32 %v1720, %v1748
        %v1750 = vpop.f32.mrf.mxu0
        %v1751 = vadd.f32 %v1722, %v1750
        %1752 = vmatmul.bf16.gmra.mxu0 %v591
        %v1753 = vpop.f32.mrf.mxu0
        %v1754 = vadd.f32 %v1725, %v1753
        %v1755 = vpop.f32.mrf.mxu0
        %v1756 = vadd.f32 %v1727, %v1755
        %1757 = vmatmul.bf16.gmra.mxu0 %v598
        %v1758 = vpop.f32.mrf.mxu0
        %v1759 = vadd.f32 %v1730, %v1758
        %v1760 = vpop.f32.mrf.mxu0
        %v1761 = vadd.f32 %v1732, %v1760
        %1762 = vdwg.mxu0
        %1763 = vmatpush.bf16.msra.mxu0 %v1401
        %1764 = vmatpush.bf16.msra.mxu0 %v1397
        %1765 = vmatpush.bf16.msra.mxu0 %v1393
        %1766 = vmatpush.bf16.msra.mxu0 %v1389
        %1767 = vmatpush.bf16.msra.mxu0 %v1385
        %1768 = vmatpush.bf16.msra.mxu0 %v1381
        %1769 = vmatpush.bf16.msra.mxu0 %v1377
        %1770 = vmatpush.bf16.msra.mxu0 %v1373
        %1771 = vmatmul.bf16.gmra.mxu0 %v578
        %v1772 = vpop.f32.mrf.mxu0
        %v1773 = vadd.f32 %v1744, %v1772
        %v1774 = vpop.f32.mrf.mxu0
        %v1775 = vadd.f32 %v1746, %v1774
        %1776 = vmatmul.bf16.gmra.mxu0 %v585
        %v1777 = vpop.f32.mrf.mxu0
        %v1778 = vadd.f32 %v1749, %v1777
        %v1779 = vpop.f32.mrf.mxu0
        %v1780 = vadd.f32 %v1751, %v1779
        %1781 = vmatmul.bf16.gmra.mxu0 %v592
        %v1782 = vpop.f32.mrf.mxu0
        %v1783 = vadd.f32 %v1754, %v1782
        %v1784 = vpop.f32.mrf.mxu0
        %v1785 = vadd.f32 %v1756, %v1784
        %1786 = vmatmul.bf16.gmra.mxu0 %v599
        %v1787 = vpop.f32.mrf.mxu0
        %v1788 = vadd.f32 %v1759, %v1787
        %v1789 = vpop.f32.mrf.mxu0
        %v1790 = vadd.f32 %v1761, %v1789
        %1791 = vdwg.mxu0
        %1792 = vmatpush.bf16.msra.mxu0 0
        %1793 = vmatpush.bf16.msra.mxu0 0
        %1794 = vmatpush.bf16.msra.mxu0 0
        %1795 = vmatpush.bf16.msra.mxu0 0
        %1796 = vmatpush.bf16.msra.mxu0 0
        %1797 = vmatpush.bf16.msra.mxu0 0
        %1798 = vmatpush.bf16.msra.mxu0 0
        %1799 = vmatpush.bf16.msra.mxu0 %v1405
        %1800 = vmatmul.bf16.gmra.mxu0 %v1607
        %v1801 = vpop.f32.mrf.mxu0
        %v1802 = vadd.f32 %v1773, %v1801
        %v1803 = vpop.f32.mrf.mxu0
        %v1804 = vadd.f32 %v1775, %v1803
        %1805 = vmatmul.bf16.gmra.mxu0 %v1610
        %v1806 = vpop.f32.mrf.mxu0
        %v1807 = vadd.f32 %v1778, %v1806
        %v1808 = vpop.f32.mrf.mxu0
        %v1809 = vadd.f32 %v1780, %v1808
        %1810 = vmatmul.bf16.gmra.mxu0 %v1613
        %v1811 = vpop.f32.mrf.mxu0
        %v1812 = vadd.f32 %v1783, %v1811
        %v1813 = vpop.f32.mrf.mxu0
        %v1814 = vadd.f32 %v1785, %v1813
        %1815 = vmatmul.bf16.gmra.mxu0 %v1616
        %v1816 = vpop.f32.mrf.mxu0
        %v1817 = vadd.f32 %v1788, %v1816
        %v1818 = vpop.f32.mrf.mxu0
        %v1819 = vadd.f32 %v1790, %v1818
        %1820 = vdwg.mxu0
        %1821 = vmatpush.bf16.msra.mxu0 %v1242
        %1822 = vmatpush.bf16.msra.mxu0 %v1238
        %1823 = vmatpush.bf16.msra.mxu0 %v1234
        %1824 = vmatpush.bf16.msra.mxu0 %v1230
        %1825 = vmatpush.bf16.msra.mxu0 %v1226
        %1826 = vmatpush.bf16.msra.mxu0 %v1222
        %1827 = vmatpush.bf16.msra.mxu0 %v1218
        %1828 = vmatpush.bf16.msra.mxu0 %v1214
        %1829 = vmatmul.bf16.gmra.mxu0 %v573
        %v1830 = vpop.f32.mrf.mxu0
        %v1831 = vadd.f32 %v478, %v1830
        %v1832 = vpop.f32.mrf.mxu0
        %v1833 = vadd.f32 %v478, %v1832
        %1834 = vmatmul.bf16.gmra.mxu0 %v580
        %v1835 = vpop.f32.mrf.mxu0
        %v1836 = vadd.f32 %v478, %v1835
        %v1837 = vpop.f32.mrf.mxu0
        %v1838 = vadd.f32 %v478, %v1837
        %1839 = vmatmul.bf16.gmra.mxu0 %v587
        %v1840 = vpop.f32.mrf.mxu0
        %v1841 = vadd.f32 %v478, %v1840
        %v1842 = vpop.f32.mrf.mxu0
        %v1843 = vadd.f32 %v478, %v1842
        %1844 = vmatmul.bf16.gmra.mxu0 %v594
        %v1845 = vpop.f32.mrf.mxu0
        %v1846 = vadd.f32 %v478, %v1845
        %v1847 = vpop.f32.mrf.mxu0
        %v1848 = vadd.f32 %v478, %v1847
        %1849 = vdwg.mxu0
        %1850 = vmatpush.bf16.msra.mxu0 %v1274
        %1851 = vmatpush.bf16.msra.mxu0 %v1270
        %1852 = vmatpush.bf16.msra.mxu0 %v1266
        %1853 = vmatpush.bf16.msra.mxu0 %v1262
        %1854 = vmatpush.bf16.msra.mxu0 %v1258
        %1855 = vmatpush.bf16.msra.mxu0 %v1254
        %1856 = vmatpush.bf16.msra.mxu0 %v1250
        %1857 = vmatpush.bf16.msra.mxu0 %v1246
        %1858 = vmatmul.bf16.gmra.mxu0 %v574
        %v1859 = vpop.f32.mrf.mxu0
        %v1860 = vadd.f32 %v1831, %v1859
        %v1861 = vpop.f32.mrf.mxu0
        %v1862 = vadd.f32 %v1833, %v1861
        %1863 = vmatmul.bf16.gmra.mxu0 %v581
        %v1864 = vpop.f32.mrf.mxu0
        %v1865 = vadd.f32 %v1836, %v1864
        %v1866 = vpop.f32.mrf.mxu0
        %v1867 = vadd.f32 %v1838, %v1866
        %1868 = vmatmul.bf16.gmra.mxu0 %v588
        %v1869 = vpop.f32.mrf.mxu0
        %v1870 = vadd.f32 %v1841, %v1869
        %v1871 = vpop.f32.mrf.mxu0
        %v1872 = vadd.f32 %v1843, %v1871
        %1873 = vmatmul.bf16.gmra.mxu0 %v595
        %v1874 = vpop.f32.mrf.mxu0
        %v1875 = vadd.f32 %v1846, %v1874
        %v1876 = vpop.f32.mrf.mxu0
        %v1877 = vadd.f32 %v1848, %v1876
        %1878 = vdwg.mxu0
        %1879 = vmatpush.bf16.msra.mxu0 %v1306
        %1880 = vmatpush.bf16.msra.mxu0 %v1302
        %1881 = vmatpush.bf16.msra.mxu0 %v1298
        %1882 = vmatpush.bf16.msra.mxu0 %v1294
        %1883 = vmatpush.bf16.msra.mxu0 %v1290
        %1884 = vmatpush.bf16.msra.mxu0 %v1286
        %1885 = vmatpush.bf16.msra.mxu0 %v1282
        %1886 = vmatpush.bf16.msra.mxu0 %v1278
        %1887 = vmatmul.bf16.gmra.mxu0 %v575
        %v1888 = vpop.f32.mrf.mxu0
        %v1889 = vadd.f32 %v1860, %v1888
        %v1890 = vpop.f32.mrf.mxu0
        %v1891 = vadd.f32 %v1862, %v1890
        %1892 = vmatmul.bf16.gmra.mxu0 %v582
        %v1893 = vpop.f32.mrf.mxu0
        %v1894 = vadd.f32 %v1865, %v1893
        %v1895 = vpop.f32.mrf.mxu0
        %v1896 = vadd.f32 %v1867, %v1895
        %1897 = vmatmul.bf16.gmra.mxu0 %v589
        %v1898 = vpop.f32.mrf.mxu0
        %v1899 = vadd.f32 %v1870, %v1898
        %v1900 = vpop.f32.mrf.mxu0
        %v1901 = vadd.f32 %v1872, %v1900
        %1902 = vmatmul.bf16.gmra.mxu0 %v596
        %v1903 = vpop.f32.mrf.mxu0
        %v1904 = vadd.f32 %v1875, %v1903
        %v1905 = vpop.f32.mrf.mxu0
        %v1906 = vadd.f32 %v1877, %v1905
        %1907 = vdwg.mxu0
        %1908 = vmatpush.bf16.msra.mxu0 %v1338
        %1909 = vmatpush.bf16.msra.mxu0 %v1334
        %1910 = vmatpush.bf16.msra.mxu0 %v1330
        %1911 = vmatpush.bf16.msra.mxu0 %v1326
        %1912 = vmatpush.bf16.msra.mxu0 %v1322
        %1913 = vmatpush.bf16.msra.mxu0 %v1318
        %1914 = vmatpush.bf16.msra.mxu0 %v1314
        %1915 = vmatpush.bf16.msra.mxu0 %v1310
        %1916 = vmatmul.bf16.gmra.mxu0 %v576
        %v1917 = vpop.f32.mrf.mxu0
        %v1918 = vadd.f32 %v1889, %v1917
        %v1919 = vpop.f32.mrf.mxu0
        %v1920 = vadd.f32 %v1891, %v1919
        %1921 = vmatmul.bf16.gmra.mxu0 %v583
        %v1922 = vpop.f32.mrf.mxu0
        %v1923 = vadd.f32 %v1894, %v1922
        %v1924 = vpop.f32.mrf.mxu0
        %v1925 = vadd.f32 %v1896, %v1924
        %1926 = vmatmul.bf16.gmra.mxu0 %v590
        %v1927 = vpop.f32.mrf.mxu0
        %v1928 = vadd.f32 %v1899, %v1927
        %v1929 = vpop.f32.mrf.mxu0
        %v1930 = vadd.f32 %v1901, %v1929
        %1931 = vmatmul.bf16.gmra.mxu0 %v597
        %v1932 = vpop.f32.mrf.mxu0
        %v1933 = vadd.f32 %v1904, %v1932
        %v1934 = vpop.f32.mrf.mxu0
        %v1935 = vadd.f32 %v1906, %v1934
        %1936 = vdwg.mxu0
        %1937 = vmatpush.bf16.msra.mxu0 %v1370
        %1938 = vmatpush.bf16.msra.mxu0 %v1366
        %1939 = vmatpush.bf16.msra.mxu0 %v1362
        %1940 = vmatpush.bf16.msra.mxu0 %v1358
        %1941 = vmatpush.bf16.msra.mxu0 %v1354
        %1942 = vmatpush.bf16.msra.mxu0 %v1350
        %1943 = vmatpush.bf16.msra.mxu0 %v1346
        %1944 = vmatpush.bf16.msra.mxu0 %v1342
        %1945 = vmatmul.bf16.gmra.mxu0 %v577
        %v1946 = vpop.f32.mrf.mxu0
        %v1947 = vadd.f32 %v1918, %v1946
        %v1948 = vpop.f32.mrf.mxu0
        %v1949 = vadd.f32 %v1920, %v1948
        %1950 = vmatmul.bf16.gmra.mxu0 %v584
        %v1951 = vpop.f32.mrf.mxu0
        %v1952 = vadd.f32 %v1923, %v1951
        %v1953 = vpop.f32.mrf.mxu0
        %v1954 = vadd.f32 %v1925, %v1953
        %1955 = vmatmul.bf16.gmra.mxu0 %v591
        %v1956 = vpop.f32.mrf.mxu0
        %v1957 = vadd.f32 %v1928, %v1956
        %v1958 = vpop.f32.mrf.mxu0
        %v1959 = vadd.f32 %v1930, %v1958
        %1960 = vmatmul.bf16.gmra.mxu0 %v598
        %v1961 = vpop.f32.mrf.mxu0
        %v1962 = vadd.f32 %v1933, %v1961
        %v1963 = vpop.f32.mrf.mxu0
        %v1964 = vadd.f32 %v1935, %v1963
        %1965 = vdwg.mxu0
        %1966 = vmatpush.bf16.msra.mxu0 %v1402
        %1967 = vmatpush.bf16.msra.mxu0 %v1398
        %1968 = vmatpush.bf16.msra.mxu0 %v1394
        %1969 = vmatpush.bf16.msra.mxu0 %v1390
        %1970 = vmatpush.bf16.msra.mxu0 %v1386
        %1971 = vmatpush.bf16.msra.mxu0 %v1382
        %1972 = vmatpush.bf16.msra.mxu0 %v1378
        %1973 = vmatpush.bf16.msra.mxu0 %v1374
        %1974 = vmatmul.bf16.gmra.mxu0 %v578
        %v1975 = vpop.f32.mrf.mxu0
        %v1976 = vadd.f32 %v1947, %v1975
        %v1977 = vpop.f32.mrf.mxu0
        %v1978 = vadd.f32 %v1949, %v1977
        %1979 = vmatmul.bf16.gmra.mxu0 %v585
        %v1980 = vpop.f32.mrf.mxu0
        %v1981 = vadd.f32 %v1952, %v1980
        %v1982 = vpop.f32.mrf.mxu0
        %v1983 = vadd.f32 %v1954, %v1982
        %1984 = vmatmul.bf16.gmra.mxu0 %v592
        %v1985 = vpop.f32.mrf.mxu0
        %v1986 = vadd.f32 %v1957, %v1985
        %v1987 = vpop.f32.mrf.mxu0
        %v1988 = vadd.f32 %v1959, %v1987
        %1989 = vmatmul.bf16.gmra.mxu0 %v599
        %v1990 = vpop.f32.mrf.mxu0
        %v1991 = vadd.f32 %v1962, %v1990
        %v1992 = vpop.f32.mrf.mxu0
        %v1993 = vadd.f32 %v1964, %v1992
        %1994 = vdwg.mxu0
        %1995 = vmatpush.bf16.msra.mxu0 0
        %1996 = vmatpush.bf16.msra.mxu0 0
        %1997 = vmatpush.bf16.msra.mxu0 0
        %1998 = vmatpush.bf16.msra.mxu0 0
        %1999 = vmatpush.bf16.msra.mxu0 0
        %2000 = vmatpush.bf16.msra.mxu0 0
        %2001 = vmatpush.bf16.msra.mxu0 0
        %2002 = vmatpush.bf16.msra.mxu0 %v1406
        %2003 = vmatmul.bf16.gmra.mxu0 %v1607
        %v2004 = vpop.f32.mrf.mxu0
        %v2005 = vadd.f32 %v1976, %v2004
        %v2006 = vpop.f32.mrf.mxu0
        %v2007 = vadd.f32 %v1978, %v2006
        %2008 = vmatmul.bf16.gmra.mxu0 %v1610
        %v2009 = vpop.f32.mrf.mxu0
        %v2010 = vadd.f32 %v1981, %v2009
        %v2011 = vpop.f32.mrf.mxu0
        %v2012 = vadd.f32 %v1983, %v2011
        %2013 = vmatmul.bf16.gmra.mxu0 %v1613
        %v2014 = vpop.f32.mrf.mxu0
        %v2015 = vadd.f32 %v1986, %v2014
        %v2016 = vpop.f32.mrf.mxu0
        %v2017 = vadd.f32 %v1988, %v2016
        %2018 = vmatmul.bf16.gmra.mxu0 %v1616
        %v2019 = vpop.f32.mrf.mxu0
        %v2020 = vadd.f32 %v1991, %v2019
        %v2021 = vpop.f32.mrf.mxu0
        %v2022 = vadd.f32 %v1993, %v2021
        %2023 = vdwg.mxu0
        %2024 = vmatpush.bf16.msra.mxu0 %v1243
        %2025 = vmatpush.bf16.msra.mxu0 %v1239
        %2026 = vmatpush.bf16.msra.mxu0 %v1235
        %2027 = vmatpush.bf16.msra.mxu0 %v1231
        %2028 = vmatpush.bf16.msra.mxu0 %v1227
        %2029 = vmatpush.bf16.msra.mxu0 %v1223
        %2030 = vmatpush.bf16.msra.mxu0 %v1219
        %2031 = vmatpush.bf16.msra.mxu0 %v1215
        %2032 = vmatmul.bf16.gmra.mxu0 %v573
        %v2033 = vpop.f32.mrf.mxu0
        %v2034 = vadd.f32 %v479, %v2033
        %v2035 = vpop.f32.mrf.mxu0
        %v2036 = vadd.f32 %v479, %v2035
        %2037 = vmatmul.bf16.gmra.mxu0 %v580
        %v2038 = vpop.f32.mrf.mxu0
        %v2039 = vadd.f32 %v479, %v2038
        %v2040 = vpop.f32.mrf.mxu0
        %v2041 = vadd.f32 %v479, %v2040
        %2042 = vmatmul.bf16.gmra.mxu0 %v587
        %v2043 = vpop.f32.mrf.mxu0
        %v2044 = vadd.f32 %v479, %v2043
        %v2045 = vpop.f32.mrf.mxu0
        %v2046 = vadd.f32 %v479, %v2045
        %2047 = vmatmul.bf16.gmra.mxu0 %v594
        %v2048 = vpop.f32.mrf.mxu0
        %v2049 = vadd.f32 %v479, %v2048
        %v2050 = vpop.f32.mrf.mxu0
        %v2051 = vadd.f32 %v479, %v2050
        %2052 = vdwg.mxu0
        %2053 = vmatpush.bf16.msra.mxu0 %v1275
        %2054 = vmatpush.bf16.msra.mxu0 %v1271
        %2055 = vmatpush.bf16.msra.mxu0 %v1267
        %2056 = vmatpush.bf16.msra.mxu0 %v1263
        %2057 = vmatpush.bf16.msra.mxu0 %v1259
        %2058 = vmatpush.bf16.msra.mxu0 %v1255
        %2059 = vmatpush.bf16.msra.mxu0 %v1251
        %2060 = vmatpush.bf16.msra.mxu0 %v1247
        %2061 = vmatmul.bf16.gmra.mxu0 %v574
        %v2062 = vpop.f32.mrf.mxu0
        %v2063 = vadd.f32 %v2034, %v2062
        %v2064 = vpop.f32.mrf.mxu0
        %v2065 = vadd.f32 %v2036, %v2064
        %2066 = vmatmul.bf16.gmra.mxu0 %v581
        %v2067 = vpop.f32.mrf.mxu0
        %v2068 = vadd.f32 %v2039, %v2067
        %v2069 = vpop.f32.mrf.mxu0
        %v2070 = vadd.f32 %v2041, %v2069
        %2071 = vmatmul.bf16.gmra.mxu0 %v588
        %v2072 = vpop.f32.mrf.mxu0
        %v2073 = vadd.f32 %v2044, %v2072
        %v2074 = vpop.f32.mrf.mxu0
        %v2075 = vadd.f32 %v2046, %v2074
        %2076 = vmatmul.bf16.gmra.mxu0 %v595
        %v2077 = vpop.f32.mrf.mxu0
        %v2078 = vadd.f32 %v2049, %v2077
        %v2079 = vpop.f32.mrf.mxu0
        %v2080 = vadd.f32 %v2051, %v2079
        %2081 = vdwg.mxu0
        %2082 = vmatpush.bf16.msra.mxu0 %v1307
        %2083 = vmatpush.bf16.msra.mxu0 %v1303
        %2084 = vmatpush.bf16.msra.mxu0 %v1299
        %2085 = vmatpush.bf16.msra.mxu0 %v1295
        %2086 = vmatpush.bf16.msra.mxu0 %v1291
        %2087 = vmatpush.bf16.msra.mxu0 %v1287
        %2088 = vmatpush.bf16.msra.mxu0 %v1283
        %2089 = vmatpush.bf16.msra.mxu0 %v1279
        %2090 = vmatmul.bf16.gmra.mxu0 %v575
        %v2091 = vpop.f32.mrf.mxu0
        %v2092 = vadd.f32 %v2063, %v2091
        %v2093 = vpop.f32.mrf.mxu0
        %v2094 = vadd.f32 %v2065, %v2093
        %2095 = vmatmul.bf16.gmra.mxu0 %v582
        %v2096 = vpop.f32.mrf.mxu0
        %v2097 = vadd.f32 %v2068, %v2096
        %v2098 = vpop.f32.mrf.mxu0
        %v2099 = vadd.f32 %v2070, %v2098
        %2100 = vmatmul.bf16.gmra.mxu0 %v589
        %v2101 = vpop.f32.mrf.mxu0
        %v2102 = vadd.f32 %v2073, %v2101
        %v2103 = vpop.f32.mrf.mxu0
        %v2104 = vadd.f32 %v2075, %v2103
        %2105 = vmatmul.bf16.gmra.mxu0 %v596
        %v2106 = vpop.f32.mrf.mxu0
        %v2107 = vadd.f32 %v2078, %v2106
        %v2108 = vpop.f32.mrf.mxu0
        %v2109 = vadd.f32 %v2080, %v2108
        %2110 = vdwg.mxu0
        %2111 = vmatpush.bf16.msra.mxu0 %v1339
        %2112 = vmatpush.bf16.msra.mxu0 %v1335
        %2113 = vmatpush.bf16.msra.mxu0 %v1331
        %2114 = vmatpush.bf16.msra.mxu0 %v1327
        %2115 = vmatpush.bf16.msra.mxu0 %v1323
        %2116 = vmatpush.bf16.msra.mxu0 %v1319
        %2117 = vmatpush.bf16.msra.mxu0 %v1315
        %2118 = vmatpush.bf16.msra.mxu0 %v1311
        %2119 = vmatmul.bf16.gmra.mxu0 %v576
        %v2120 = vpop.f32.mrf.mxu0
        %v2121 = vadd.f32 %v2092, %v2120
        %v2122 = vpop.f32.mrf.mxu0
        %v2123 = vadd.f32 %v2094, %v2122
        %2124 = vmatmul.bf16.gmra.mxu0 %v583
        %v2125 = vpop.f32.mrf.mxu0
        %v2126 = vadd.f32 %v2097, %v2125
        %v2127 = vpop.f32.mrf.mxu0
        %v2128 = vadd.f32 %v2099, %v2127
        %2129 = vmatmul.bf16.gmra.mxu0 %v590
        %v2130 = vpop.f32.mrf.mxu0
        %v2131 = vadd.f32 %v2102, %v2130
        %v2132 = vpop.f32.mrf.mxu0
        %v2133 = vadd.f32 %v2104, %v2132
        %2134 = vmatmul.bf16.gmra.mxu0 %v597
        %v2135 = vpop.f32.mrf.mxu0
        %v2136 = vadd.f32 %v2107, %v2135
        %v2137 = vpop.f32.mrf.mxu0
        %v2138 = vadd.f32 %v2109, %v2137
        %2139 = vdwg.mxu0
        %2140 = vmatpush.bf16.msra.mxu0 %v1371
        %2141 = vmatpush.bf16.msra.mxu0 %v1367
        %2142 = vmatpush.bf16.msra.mxu0 %v1363
        %2143 = vmatpush.bf16.msra.mxu0 %v1359
        %2144 = vmatpush.bf16.msra.mxu0 %v1355
        %2145 = vmatpush.bf16.msra.mxu0 %v1351
        %2146 = vmatpush.bf16.msra.mxu0 %v1347
        %2147 = vmatpush.bf16.msra.mxu0 %v1343
        %2148 = vmatmul.bf16.gmra.mxu0 %v577
        %v2149 = vpop.f32.mrf.mxu0
        %v2150 = vadd.f32 %v2121, %v2149
        %v2151 = vpop.f32.mrf.mxu0
        %v2152 = vadd.f32 %v2123, %v2151
        %2153 = vmatmul.bf16.gmra.mxu0 %v584
        %v2154 = vpop.f32.mrf.mxu0
        %v2155 = vadd.f32 %v2126, %v2154
        %v2156 = vpop.f32.mrf.mxu0
        %v2157 = vadd.f32 %v2128, %v2156
        %2158 = vmatmul.bf16.gmra.mxu0 %v591
        %v2159 = vpop.f32.mrf.mxu0
        %v2160 = vadd.f32 %v2131, %v2159
        %v2161 = vpop.f32.mrf.mxu0
        %v2162 = vadd.f32 %v2133, %v2161
        %2163 = vmatmul.bf16.gmra.mxu0 %v598
        %v2164 = vpop.f32.mrf.mxu0
        %v2165 = vadd.f32 %v2136, %v2164
        %v2166 = vpop.f32.mrf.mxu0
        %v2167 = vadd.f32 %v2138, %v2166
        %2168 = vdwg.mxu0
        %2169 = vmatpush.bf16.msra.mxu0 %v1403
        %2170 = vmatpush.bf16.msra.mxu0 %v1399
        %2171 = vmatpush.bf16.msra.mxu0 %v1395
        %2172 = vmatpush.bf16.msra.mxu0 %v1391
        %2173 = vmatpush.bf16.msra.mxu0 %v1387
        %2174 = vmatpush.bf16.msra.mxu0 %v1383
        %2175 = vmatpush.bf16.msra.mxu0 %v1379
        %2176 = vmatpush.bf16.msra.mxu0 %v1375
        %2177 = vmatmul.bf16.gmra.mxu0 %v578
        %v2178 = vpop.f32.mrf.mxu0
        %v2179 = vadd.f32 %v2150, %v2178
        %v2180 = vpop.f32.mrf.mxu0
        %v2181 = vadd.f32 %v2152, %v2180
        %2182 = vmatmul.bf16.gmra.mxu0 %v585
        %v2183 = vpop.f32.mrf.mxu0
        %v2184 = vadd.f32 %v2155, %v2183
        %v2185 = vpop.f32.mrf.mxu0
        %v2186 = vadd.f32 %v2157, %v2185
        %2187 = vmatmul.bf16.gmra.mxu0 %v592
        %v2188 = vpop.f32.mrf.mxu0
        %v2189 = vadd.f32 %v2160, %v2188
        %v2190 = vpop.f32.mrf.mxu0
        %v2191 = vadd.f32 %v2162, %v2190
        %2192 = vmatmul.bf16.gmra.mxu0 %v599
        %v2193 = vpop.f32.mrf.mxu0
        %v2194 = vadd.f32 %v2165, %v2193
        %v2195 = vpop.f32.mrf.mxu0
        %v2196 = vadd.f32 %v2167, %v2195
        %2197 = vdwg.mxu0
        %2198 = vmatpush.bf16.msra.mxu0 0
        %2199 = vmatpush.bf16.msra.mxu0 0
        %2200 = vmatpush.bf16.msra.mxu0 0
        %2201 = vmatpush.bf16.msra.mxu0 0
        %2202 = vmatpush.bf16.msra.mxu0 0
        %2203 = vmatpush.bf16.msra.mxu0 0
        %2204 = vmatpush.bf16.msra.mxu0 0
        %2205 = vmatpush.bf16.msra.mxu0 %v1407
        %2206 = vmatmul.bf16.gmra.mxu0 %v1607
        %v2207 = vpop.f32.mrf.mxu0
        %v2208 = vadd.f32 %v2179, %v2207
        %v2209 = vpop.f32.mrf.mxu0
        %v2210 = vadd.f32 %v2181, %v2209
        %2211 = vmatmul.bf16.gmra.mxu0 %v1610
        %v2212 = vpop.f32.mrf.mxu0
        %v2213 = vadd.f32 %v2184, %v2212
        %v2214 = vpop.f32.mrf.mxu0
        %v2215 = vadd.f32 %v2186, %v2214
        %2216 = vmatmul.bf16.gmra.mxu0 %v1613
        %v2217 = vpop.f32.mrf.mxu0
        %v2218 = vadd.f32 %v2189, %v2217
        %v2219 = vpop.f32.mrf.mxu0
        %v2220 = vadd.f32 %v2191, %v2219
        %2221 = vmatmul.bf16.gmra.mxu0 %v1616
        %v2222 = vpop.f32.mrf.mxu0
        %v2223 = vadd.f32 %v2194, %v2222
        %v2224 = vpop.f32.mrf.mxu0
        %v2225 = vadd.f32 %v2196, %v2224
        %2226 = vdwg.mxu0
        %2227 = vmatpush.bf16.msra.mxu0 %v1244
        %2228 = vmatpush.bf16.msra.mxu0 %v1240
        %2229 = vmatpush.bf16.msra.mxu0 %v1236
        %2230 = vmatpush.bf16.msra.mxu0 %v1232
        %2231 = vmatpush.bf16.msra.mxu0 %v1228
        %2232 = vmatpush.bf16.msra.mxu0 %v1224
        %2233 = vmatpush.bf16.msra.mxu0 %v1220
        %2234 = vmatpush.bf16.msra.mxu0 %v1216
        %2235 = vmatmul.bf16.gmra.mxu0 %v573
        %v2236 = vpop.f32.mrf.mxu0
        %v2237 = vadd.f32 %v480, %v2236
        %v2238 = vpop.f32.mrf.mxu0
        %v2239 = vadd.f32 %v480, %v2238
        %2240 = vmatmul.bf16.gmra.mxu0 %v580
        %v2241 = vpop.f32.mrf.mxu0
        %v2242 = vadd.f32 %v480, %v2241
        %v2243 = vpop.f32.mrf.mxu0
        %v2244 = vadd.f32 %v480, %v2243
        %2245 = vmatmul.bf16.gmra.mxu0 %v587
        %v2246 = vpop.f32.mrf.mxu0
        %v2247 = vadd.f32 %v480, %v2246
        %v2248 = vpop.f32.mrf.mxu0
        %v2249 = vadd.f32 %v480, %v2248
        %2250 = vmatmul.bf16.gmra.mxu0 %v594
        %v2251 = vpop.f32.mrf.mxu0
        %v2252 = vadd.f32 %v480, %v2251
        %v2253 = vpop.f32.mrf.mxu0
        %v2254 = vadd.f32 %v480, %v2253
        %2255 = vdwg.mxu0
        %2256 = vmatpush.bf16.msra.mxu0 %v1276
        %2257 = vmatpush.bf16.msra.mxu0 %v1272
        %2258 = vmatpush.bf16.msra.mxu0 %v1268
        %2259 = vmatpush.bf16.msra.mxu0 %v1264
        %2260 = vmatpush.bf16.msra.mxu0 %v1260
        %2261 = vmatpush.bf16.msra.mxu0 %v1256
        %2262 = vmatpush.bf16.msra.mxu0 %v1252
        %2263 = vmatpush.bf16.msra.mxu0 %v1248
        %2264 = vmatmul.bf16.gmra.mxu0 %v574
        %v2265 = vpop.f32.mrf.mxu0
        %v2266 = vadd.f32 %v2237, %v2265
        %v2267 = vpop.f32.mrf.mxu0
        %v2268 = vadd.f32 %v2239, %v2267
        %2269 = vmatmul.bf16.gmra.mxu0 %v581
        %v2270 = vpop.f32.mrf.mxu0
        %v2271 = vadd.f32 %v2242, %v2270
        %v2272 = vpop.f32.mrf.mxu0
        %v2273 = vadd.f32 %v2244, %v2272
        %2274 = vmatmul.bf16.gmra.mxu0 %v588
        %v2275 = vpop.f32.mrf.mxu0
        %v2276 = vadd.f32 %v2247, %v2275
        %v2277 = vpop.f32.mrf.mxu0
        %v2278 = vadd.f32 %v2249, %v2277
        %2279 = vmatmul.bf16.gmra.mxu0 %v595
        %v2280 = vpop.f32.mrf.mxu0
        %v2281 = vadd.f32 %v2252, %v2280
        %v2282 = vpop.f32.mrf.mxu0
        %v2283 = vadd.f32 %v2254, %v2282
        %2284 = vdwg.mxu0
        %2285 = vmatpush.bf16.msra.mxu0 %v1308
        %2286 = vmatpush.bf16.msra.mxu0 %v1304
        %2287 = vmatpush.bf16.msra.mxu0 %v1300
        %2288 = vmatpush.bf16.msra.mxu0 %v1296
        %2289 = vmatpush.bf16.msra.mxu0 %v1292
        %2290 = vmatpush.bf16.msra.mxu0 %v1288
        %2291 = vmatpush.bf16.msra.mxu0 %v1284
        %2292 = vmatpush.bf16.msra.mxu0 %v1280
        %2293 = vmatmul.bf16.gmra.mxu0 %v575
        %v2294 = vpop.f32.mrf.mxu0
        %v2295 = vadd.f32 %v2266, %v2294
        %v2296 = vpop.f32.mrf.mxu0
        %v2297 = vadd.f32 %v2268, %v2296
        %2298 = vmatmul.bf16.gmra.mxu0 %v582
        %v2299 = vpop.f32.mrf.mxu0
        %v2300 = vadd.f32 %v2271, %v2299
        %v2301 = vpop.f32.mrf.mxu0
        %v2302 = vadd.f32 %v2273, %v2301
        %2303 = vmatmul.bf16.gmra.mxu0 %v589
        %v2304 = vpop.f32.mrf.mxu0
        %v2305 = vadd.f32 %v2276, %v2304
        %v2306 = vpop.f32.mrf.mxu0
        %v2307 = vadd.f32 %v2278, %v2306
        %2308 = vmatmul.bf16.gmra.mxu0 %v596
        %v2309 = vpop.f32.mrf.mxu0
        %v2310 = vadd.f32 %v2281, %v2309
        %v2311 = vpop.f32.mrf.mxu0
        %v2312 = vadd.f32 %v2283, %v2311
        %2313 = vdwg.mxu0
        %2314 = vmatpush.bf16.msra.mxu0 %v1340
        %2315 = vmatpush.bf16.msra.mxu0 %v1336
        %2316 = vmatpush.bf16.msra.mxu0 %v1332
        %2317 = vmatpush.bf16.msra.mxu0 %v1328
        %2318 = vmatpush.bf16.msra.mxu0 %v1324
        %2319 = vmatpush.bf16.msra.mxu0 %v1320
        %2320 = vmatpush.bf16.msra.mxu0 %v1316
        %2321 = vmatpush.bf16.msra.mxu0 %v1312
        %2322 = vmatmul.bf16.gmra.mxu0 %v576
        %v2323 = vpop.f32.mrf.mxu0
        %v2324 = vadd.f32 %v2295, %v2323
        %v2325 = vpop.f32.mrf.mxu0
        %v2326 = vadd.f32 %v2297, %v2325
        %2327 = vmatmul.bf16.gmra.mxu0 %v583
        %v2328 = vpop.f32.mrf.mxu0
        %v2329 = vadd.f32 %v2300, %v2328
        %v2330 = vpop.f32.mrf.mxu0
        %v2331 = vadd.f32 %v2302, %v2330
        %2332 = vmatmul.bf16.gmra.mxu0 %v590
        %v2333 = vpop.f32.mrf.mxu0
        %v2334 = vadd.f32 %v2305, %v2333
        %v2335 = vpop.f32.mrf.mxu0
        %v2336 = vadd.f32 %v2307, %v2335
        %2337 = vmatmul.bf16.gmra.mxu0 %v597
        %v2338 = vpop.f32.mrf.mxu0
        %v2339 = vadd.f32 %v2310, %v2338
        %v2340 = vpop.f32.mrf.mxu0
        %v2341 = vadd.f32 %v2312, %v2340
        %2342 = vdwg.mxu0
        %2343 = vmatpush.bf16.msra.mxu0 %v1372
        %2344 = vmatpush.bf16.msra.mxu0 %v1368
        %2345 = vmatpush.bf16.msra.mxu0 %v1364
        %2346 = vmatpush.bf16.msra.mxu0 %v1360
        %2347 = vmatpush.bf16.msra.mxu0 %v1356
        %2348 = vmatpush.bf16.msra.mxu0 %v1352
        %2349 = vmatpush.bf16.msra.mxu0 %v1348
        %2350 = vmatpush.bf16.msra.mxu0 %v1344
        %2351 = vmatmul.bf16.gmra.mxu0 %v577
        %v2352 = vpop.f32.mrf.mxu0
        %v2353 = vadd.f32 %v2324, %v2352
        %v2354 = vpop.f32.mrf.mxu0
        %v2355 = vadd.f32 %v2326, %v2354
        %2356 = vmatmul.bf16.gmra.mxu0 %v584
        %v2357 = vpop.f32.mrf.mxu0
        %v2358 = vadd.f32 %v2329, %v2357
        %v2359 = vpop.f32.mrf.mxu0
        %v2360 = vadd.f32 %v2331, %v2359
        %2361 = vmatmul.bf16.gmra.mxu0 %v591
        %v2362 = vpop.f32.mrf.mxu0
        %v2363 = vadd.f32 %v2334, %v2362
        %v2364 = vpop.f32.mrf.mxu0
        %v2365 = vadd.f32 %v2336, %v2364
        %2366 = vmatmul.bf16.gmra.mxu0 %v598
        %v2367 = vpop.f32.mrf.mxu0
        %v2368 = vadd.f32 %v2339, %v2367
        %v2369 = vpop.f32.mrf.mxu0
        %v2370 = vadd.f32 %v2341, %v2369
        %2371 = vdwg.mxu0
        %2372 = vmatpush.bf16.msra.mxu0 %v1404
        %2373 = vmatpush.bf16.msra.mxu0 %v1400
        %2374 = vmatpush.bf16.msra.mxu0 %v1396
        %2375 = vmatpush.bf16.msra.mxu0 %v1392
        %2376 = vmatpush.bf16.msra.mxu0 %v1388
        %2377 = vmatpush.bf16.msra.mxu0 %v1384
        %2378 = vmatpush.bf16.msra.mxu0 %v1380
        %2379 = vmatpush.bf16.msra.mxu0 %v1376
        %2380 = vmatmul.bf16.gmra.mxu0 %v578
        %v2381 = vpop.f32.mrf.mxu0
        %v2382 = vadd.f32 %v2353, %v2381
        %v2383 = vpop.f32.mrf.mxu0
        %v2384 = vadd.f32 %v2355, %v2383
        %2385 = vmatmul.bf16.gmra.mxu0 %v585
        %v2386 = vpop.f32.mrf.mxu0
        %v2387 = vadd.f32 %v2358, %v2386
        %v2388 = vpop.f32.mrf.mxu0
        %v2389 = vadd.f32 %v2360, %v2388
        %2390 = vmatmul.bf16.gmra.mxu0 %v592
        %v2391 = vpop.f32.mrf.mxu0
        %v2392 = vadd.f32 %v2363, %v2391
        %v2393 = vpop.f32.mrf.mxu0
        %v2394 = vadd.f32 %v2365, %v2393
        %2395 = vmatmul.bf16.gmra.mxu0 %v599
        %v2396 = vpop.f32.mrf.mxu0
        %v2397 = vadd.f32 %v2368, %v2396
        %v2398 = vpop.f32.mrf.mxu0
        %v2399 = vadd.f32 %v2370, %v2398
        %2400 = vdwg.mxu0
        %2401 = vmatpush.bf16.msra.mxu0 0
        %2402 = vmatpush.bf16.msra.mxu0 0
        %2403 = vmatpush.bf16.msra.mxu0 0
        %2404 = vmatpush.bf16.msra.mxu0 0
        %2405 = vmatpush.bf16.msra.mxu0 0
        %2406 = vmatpush.bf16.msra.mxu0 0
        %2407 = vmatpush.bf16.msra.mxu0 0
        %2408 = vmatpush.bf16.msra.mxu0 %v1408
        %2409 = vmatmul.bf16.gmra.mxu0 %v1607
        %v2410 = vpop.f32.mrf.mxu0
        %v2411 = vadd.f32 %v2382, %v2410
        %v2412 = vpop.f32.mrf.mxu0
        %v2413 = vadd.f32 %v2384, %v2412
        %2414 = vmatmul.bf16.gmra.mxu0 %v1610
        %v2415 = vpop.f32.mrf.mxu0
        %v2416 = vadd.f32 %v2387, %v2415
        %v2417 = vpop.f32.mrf.mxu0
        %v2418 = vadd.f32 %v2389, %v2417
        %2419 = vmatmul.bf16.gmra.mxu0 %v1613
        %v2420 = vpop.f32.mrf.mxu0
        %v2421 = vadd.f32 %v2392, %v2420
        %v2422 = vpop.f32.mrf.mxu0
        %v2423 = vadd.f32 %v2394, %v2422
        %2424 = vmatmul.bf16.gmra.mxu0 %v1616
        %v2425 = vpop.f32.mrf.mxu0
        %v2426 = vadd.f32 %v2397, %v2425
        %v2427 = vpop.f32.mrf.mxu0
        %v2428 = vadd.f32 %v2399, %v2427
        %2429 = vdwg.mxu0
        %v2430 = vsub.f32 0.0, %v2208
        %v2431 = vsub.f32 0.0, %v2411
        %v2432 = vsub.f32 0.0, %v2210
        %v2433 = vsub.f32 0.0, %v2413
        %v2434 = vsub.f32 0.0, %v2213
        %v2435 = vsub.f32 0.0, %v2416
        %v2436 = vsub.f32 0.0, %v2215
        %v2437 = vsub.f32 0.0, %v2418
        %v2438 = vsub.f32 0.0, %v2218
        %v2439 = vsub.f32 0.0, %v2421
        %v2440 = vsub.f32 0.0, %v2220
        %v2441 = vsub.f32 0.0, %v2423
        %v2442 = vsub.f32 0.0, %v2223
        %v2443 = vsub.f32 0.0, %v2426
        %v2444 = vsub.f32 0.0, %v2225
        %v2445 = vsub.f32 0.0, %v2428
        %v2446 = vmul.f32 %v2430, 1.442695
        %v2447 = vpow.pop %v2446
        %v2448 = vmul.f32 %v2431, 1.442695
        %v2449 = vpow.pop %v2448
        %v2450 = vmul.f32 %v2432, 1.442695
        %v2451 = vpow.pop %v2450
        %v2452 = vmul.f32 %v2433, 1.442695
        %v2453 = vpow.pop %v2452
        %v2454 = vmul.f32 %v2434, 1.442695
        %v2455 = vpow.pop %v2454
        %v2456 = vmul.f32 %v2435, 1.442695
        %v2457 = vpow.pop %v2456
        %v2458 = vmul.f32 %v2436, 1.442695
        %v2459 = vpow.pop %v2458
        %v2460 = vmul.f32 %v2437, 1.442695
        %v2461 = vpow.pop %v2460
        %v2462 = vmul.f32 %v2438, 1.442695
        %v2463 = vpow.pop %v2462
        %v2464 = vmul.f32 %v2439, 1.442695
        %v2465 = vpow.pop %v2464
        %v2466 = vmul.f32 %v2440, 1.442695
        %v2467 = vpow.pop %v2466
        %v2468 = vmul.f32 %v2441, 1.442695
        %v2469 = vpow.pop %v2468
        %v2470 = vmul.f32 %v2442, 1.442695
        %v2471 = vpow.pop %v2470
        %v2472 = vmul.f32 %v2443, 1.442695
        %v2473 = vpow.pop %v2472
        %v2474 = vmul.f32 %v2444, 1.442695
        %v2475 = vpow.pop %v2474
        %v2476 = vmul.f32 %v2445, 1.442695
        %v2477 = vpow.pop %v2476
        %v2478 = vadd.f32 %v2447, 1.0
        %v2479 = vadd.f32 %v2449, 1.0
        %v2480 = vadd.f32 %v2451, 1.0
        %v2481 = vadd.f32 %v2453, 1.0
        %v2482 = vadd.f32 %v2455, 1.0
        %v2483 = vadd.f32 %v2457, 1.0
        %v2484 = vadd.f32 %v2459, 1.0
        %v2485 = vadd.f32 %v2461, 1.0
        %v2486 = vadd.f32 %v2463, 1.0
        %v2487 = vadd.f32 %v2465, 1.0
        %v2488 = vadd.f32 %v2467, 1.0
        %v2489 = vadd.f32 %v2469, 1.0
        %v2490 = vadd.f32 %v2471, 1.0
        %v2491 = vadd.f32 %v2473, 1.0
        %v2492 = vadd.f32 %v2475, 1.0
        %v2493 = vadd.f32 %v2477, 1.0
        %v2494 = vrcp.pop %v2478
        %v2495 = vrcp.pop %v2479
        %v2496 = vrcp.pop %v2480
        %v2497 = vrcp.pop %v2481
        %v2498 = vrcp.pop %v2482
        %v2499 = vrcp.pop %v2483
        %v2500 = vrcp.pop %v2484
        %v2501 = vrcp.pop %v2485
        %v2502 = vrcp.pop %v2486
        %v2503 = vrcp.pop %v2487
        %v2504 = vrcp.pop %v2488
        %v2505 = vrcp.pop %v2489
        %v2506 = vrcp.pop %v2490
        %v2507 = vrcp.pop %v2491
        %v2508 = vrcp.pop %v2492
        %v2509 = vrcp.pop %v2493
        %v2510 = vmul.f32 %v2494, %v1802
        %v2511 = vmul.f32 %v2495, %v2005
        %v2512 = vmul.f32 %v2496, %v1804
        %v2513 = vmul.f32 %v2497, %v2007
        %v2514 = vmul.f32 %v2498, %v1807
        %v2515 = vmul.f32 %v2499, %v2010
        %v2516 = vmul.f32 %v2500, %v1809
        %v2517 = vmul.f32 %v2501, %v2012
        %v2518 = vmul.f32 %v2502, %v1812
        %v2519 = vmul.f32 %v2503, %v2015
        %v2520 = vmul.f32 %v2504, %v1814
        %v2521 = vmul.f32 %v2505, %v2017
        %v2522 = vmul.f32 %v2506, %v1817
        %v2523 = vmul.f32 %v2507, %v2020
        %v2524 = vmul.f32 %v2508, %v1819
        %v2525 = vmul.f32 %v2509, %v2022
        %v2526 = vpack.c.bf16 %v2512, %v2510
        %v2527 = vpack.c.bf16 %v2513, %v2511
        %v2528 = vpack.c.bf16 %v2516, %v2514
        %v2529 = vpack.c.bf16 %v2517, %v2515
        %v2530 = vpack.c.bf16 %v2520, %v2518
        %v2531 = vpack.c.bf16 %v2521, %v2519
        %v2532 = vpack.c.bf16 %v2524, %v2522
        %v2533 = vpack.c.bf16 %v2525, %v2523
        %v2534 = vld [vmem:[%s3] sm:$0xff]
        %v2535 = vld [vmem:[%s3 + $0x8] sm:$0xff]
        %v2536 = vld [vmem:[%s3 + $0x10] sm:$0xff]
        %v2537 = vld [vmem:[%s3 + $0x18] sm:$0xff]
        %v2538 = vld [vmem:[%s3 + $0x20] sm:$0xff]
        %v2539 = vld [vmem:[%s3 + $0x28] sm:$0xff]
        %v2540 = vld [vmem:[%s3 + $0x30] sm:$0xff]
        %v2541 = vld [vmem:[%s3 + $0x38] sm:$0xff]
        %v2542 = vld [vmem:[%s3 + $0x40] sm:$0xff]
        %v2543 = vld [vmem:[%s3 + $0x48] sm:$0xff]
        %v2544 = vld [vmem:[%s3 + $0x50] sm:$0xff]
        %v2545 = vld [vmem:[%s3 + $0x58] sm:$0xff]
        %v2546 = vld [vmem:[%s3 + $0x60] sm:$0xff]
        %v2547 = vld [vmem:[%s3 + $0x68] sm:$0xff]
        %v2548 = vld [vmem:[%s3 + $0x70] sm:$0xff]
        %v2549 = vld [vmem:[%s3 + $0x78] sm:$0xff]
        %v2550 = vld [vmem:[%s3 + $0x80] sm:$0xff]
        %v2551 = vld [vmem:[%s3 + $0x88] sm:$0xff]
        %v2552 = vld [vmem:[%s3 + $0x90] sm:$0xff]
        %v2553 = vld [vmem:[%s3 + $0x98] sm:$0xff]
        %v2554 = vld [vmem:[%s3 + $0xa0] sm:$0xff]
        %v2555 = vld [vmem:[%s3 + $0xa8] sm:$0xff]
        %v2556 = vld [vmem:[%s3 + $0xb0] sm:$0xff]
        %v2557 = vld [vmem:[%s3 + $0xb8] sm:$0xff]
        %v2558 = vld [vmem:[%s3 + $0xc0] sm:$0xff]
        %v2559 = vld [vmem:[%s3 + $0xc8] sm:$0xff]
        %v2560 = vld [vmem:[%s3 + $0xd0] sm:$0xff]
        %v2561 = vld [vmem:[%s3 + $0xd8] sm:$0xff]
        %v2562 = vld [vmem:[%s3 + $0xe0] sm:$0xff]
        %v2563 = vld [vmem:[%s3 + $0xe8] sm:$0xff]
        %v2564 = vld [vmem:[%s3 + $0xf0] sm:$0xff]
        %v2565 = vld [vmem:[%s3 + $0xf8] sm:$0xff]
        %v2566 = vld [vmem:[%s3 + $0x100] sm:$0xff]
        %v2567 = vld [vmem:[%s3 + $0x108] sm:$0xff]
        %v2568 = vld [vmem:[%s3 + $0x110] sm:$0xff]
        %v2569 = vld [vmem:[%s3 + $0x118] sm:$0xff]
        %v2570 = vld [vmem:[%s3 + $0x120] sm:$0xff]
        %v2571 = vld [vmem:[%s3 + $0x128] sm:$0xff]
        %v2572 = vld [vmem:[%s3 + $0x130] sm:$0xff]
        %v2573 = vld [vmem:[%s3 + $0x138] sm:$0xff]
        %v2574 = vld [vmem:[%s3 + $0x140] sm:$0xff]
        %v2575 = vld [vmem:[%s3 + $0x148] sm:$0xff]
        %v2576 = vld [vmem:[%s3 + $0x150] sm:$0xff]
        %v2577 = vld [vmem:[%s3 + $0x158] sm:$0xff]
        %v2578 = vld [vmem:[%s3 + $0x160] sm:$0xff]
        %v2579 = vld [vmem:[%s3 + $0x168] sm:$0xff]
        %v2580 = vld [vmem:[%s3 + $0x170] sm:$0xff]
        %v2581 = vld [vmem:[%s3 + $0x178] sm:$0xff]
        %v2582 = vld [vmem:[%s3 + $0x180] sm:$0xff]
        %v2583 = vld [vmem:[%s3 + $0x188] sm:$0xff]
        %v2584 = vld [vmem:[%s3 + $0x190] sm:$0xff]
        %v2585 = vld [vmem:[%s3 + $0x198] sm:$0xff]
        %v2586 = vld [vmem:[%s3 + $0x1a0] sm:$0xff]
        %v2587 = vld [vmem:[%s3 + $0x1a8] sm:$0xff]
        %v2588 = vld [vmem:[%s3 + $0x1b0] sm:$0xff]
        %v2589 = vld [vmem:[%s3 + $0x1b8] sm:$0xff]
        %v2590 = vld [vmem:[%s3 + $0x1c0] sm:$0xff]
        %v2591 = vld [vmem:[%s3 + $0x1c8] sm:$0xff]
        %v2592 = vld [vmem:[%s3 + $0x1d0] sm:$0xff]
        %v2593 = vld [vmem:[%s3 + $0x1d8] sm:$0xff]
        %v2594 = vld [vmem:[%s3 + $0x1e0] sm:$0xff]
        %v2595 = vld [vmem:[%s3 + $0x1e8] sm:$0xff]
        %v2596 = vld [vmem:[%s3 + $0x1f0] sm:$0xff]
        %v2597 = vld [vmem:[%s3 + $0x1f8] sm:$0xff]
        %v2598 = vld [vmem:[%s4] sm:$0xf]
        %v2600 = vperm.slane %v2598, 0
        %v2601 = vperm.slane %v2598, 1
        %v2602 = vperm.slane %v2598, 2
        %v2603 = vperm.slane %v2598, 3
        %v2672 = vunpack.c.l.b16 %v2534
        %v2673 = vunpack.c.h.b16 %v2534
        %v2674 = vunpack.c.l.b16 %v2535
        %v2675 = vunpack.c.h.b16 %v2535
        %v2676 = vunpack.c.l.b16 %v2536
        %v2677 = vunpack.c.h.b16 %v2536
        %v2678 = vunpack.c.l.b16 %v2537
        %v2679 = vunpack.c.h.b16 %v2537
        %v2680 = vunpack.c.l.b16 %v2538
        %v2681 = vunpack.c.h.b16 %v2538
        %v2682 = vunpack.c.l.b16 %v2539
        %v2683 = vunpack.c.h.b16 %v2539
        %v2684 = vunpack.c.l.b16 %v2540
        %v2685 = vunpack.c.h.b16 %v2540
        %v2686 = vunpack.c.l.b16 %v2541
        %v2687 = vunpack.c.h.b16 %v2541
        %v2688 = vunpack.c.l.b16 %v2542
        %v2689 = vunpack.c.h.b16 %v2542
        %v2690 = vunpack.c.l.b16 %v2543
        %v2691 = vunpack.c.h.b16 %v2543
        %v2692 = vunpack.c.l.b16 %v2544
        %v2693 = vunpack.c.h.b16 %v2544
        %v2694 = vunpack.c.l.b16 %v2545
        %v2695 = vunpack.c.h.b16 %v2545
        %v2696 = vunpack.c.l.b16 %v2546
        %v2697 = vunpack.c.h.b16 %v2546
        %v2698 = vunpack.c.l.b16 %v2547
        %v2699 = vunpack.c.h.b16 %v2547
        %v2700 = vunpack.c.l.b16 %v2548
        %v2701 = vunpack.c.h.b16 %v2548
        %v2702 = vunpack.c.l.b16 %v2549
        %v2703 = vunpack.c.h.b16 %v2549
        %v2704 = vunpack.c.l.b16 %v2550
        %v2705 = vunpack.c.h.b16 %v2550
        %v2706 = vunpack.c.l.b16 %v2551
        %v2707 = vunpack.c.h.b16 %v2551
        %v2708 = vunpack.c.l.b16 %v2552
        %v2709 = vunpack.c.h.b16 %v2552
        %v2710 = vunpack.c.l.b16 %v2553
        %v2711 = vunpack.c.h.b16 %v2553
        %v2712 = vunpack.c.l.b16 %v2554
        %v2713 = vunpack.c.h.b16 %v2554
        %v2714 = vunpack.c.l.b16 %v2555
        %v2715 = vunpack.c.h.b16 %v2555
        %v2716 = vunpack.c.l.b16 %v2556
        %v2717 = vunpack.c.h.b16 %v2556
        %v2718 = vunpack.c.l.b16 %v2557
        %v2719 = vunpack.c.h.b16 %v2557
        %v2720 = vunpack.c.l.b16 %v2558
        %v2721 = vunpack.c.h.b16 %v2558
        %v2722 = vunpack.c.l.b16 %v2559
        %v2723 = vunpack.c.h.b16 %v2559
        %v2724 = vunpack.c.l.b16 %v2560
        %v2725 = vunpack.c.h.b16 %v2560
        %v2726 = vunpack.c.l.b16 %v2561
        %v2727 = vunpack.c.h.b16 %v2561
        %v2728 = vunpack.c.l.b16 %v2562
        %v2729 = vunpack.c.h.b16 %v2562
        %v2730 = vunpack.c.l.b16 %v2563
        %v2731 = vunpack.c.h.b16 %v2563
        %v2732 = vunpack.c.l.b16 %v2564
        %v2733 = vunpack.c.h.b16 %v2564
        %v2734 = vunpack.c.l.b16 %v2565
        %v2735 = vunpack.c.h.b16 %v2565
        %v2736 = vunpack.c.l.b16 %v2566
        %v2737 = vunpack.c.h.b16 %v2566
        %v2738 = vunpack.c.l.b16 %v2567
        %v2739 = vunpack.c.h.b16 %v2567
        %v2740 = vunpack.c.l.b16 %v2568
        %v2741 = vunpack.c.h.b16 %v2568
        %v2742 = vunpack.c.l.b16 %v2569
        %v2743 = vunpack.c.h.b16 %v2569
        %v2744 = vunpack.c.l.b16 %v2570
        %v2745 = vunpack.c.h.b16 %v2570
        %v2746 = vunpack.c.l.b16 %v2571
        %v2747 = vunpack.c.h.b16 %v2571
        %v2748 = vunpack.c.l.b16 %v2572
        %v2749 = vunpack.c.h.b16 %v2572
        %v2750 = vunpack.c.l.b16 %v2573
        %v2751 = vunpack.c.h.b16 %v2573
        %v2752 = vunpack.c.l.b16 %v2574
        %v2753 = vunpack.c.h.b16 %v2574
        %v2754 = vunpack.c.l.b16 %v2575
        %v2755 = vunpack.c.h.b16 %v2575
        %v2756 = vunpack.c.l.b16 %v2576
        %v2757 = vunpack.c.h.b16 %v2576
        %v2758 = vunpack.c.l.b16 %v2577
        %v2759 = vunpack.c.h.b16 %v2577
        %v2760 = vunpack.c.l.b16 %v2578
        %v2761 = vunpack.c.h.b16 %v2578
        %v2762 = vunpack.c.l.b16 %v2579
        %v2763 = vunpack.c.h.b16 %v2579
        %v2764 = vunpack.c.l.b16 %v2580
        %v2765 = vunpack.c.h.b16 %v2580
        %v2766 = vunpack.c.l.b16 %v2581
        %v2767 = vunpack.c.h.b16 %v2581
        %v2768 = vunpack.c.l.b16 %v2582
        %v2769 = vunpack.c.h.b16 %v2582
        %v2770 = vunpack.c.l.b16 %v2583
        %v2771 = vunpack.c.h.b16 %v2583
        %v2772 = vunpack.c.l.b16 %v2584
        %v2773 = vunpack.c.h.b16 %v2584
        %v2774 = vunpack.c.l.b16 %v2585
        %v2775 = vunpack.c.h.b16 %v2585
        %v2776 = vunpack.c.l.b16 %v2586
        %v2777 = vunpack.c.h.b16 %v2586
        %v2778 = vunpack.c.l.b16 %v2587
        %v2779 = vunpack.c.h.b16 %v2587
        %v2780 = vunpack.c.l.b16 %v2588
        %v2781 = vunpack.c.h.b16 %v2588
        %v2782 = vunpack.c.l.b16 %v2589
        %v2783 = vunpack.c.h.b16 %v2589
        %v2784 = vunpack.c.l.b16 %v2590
        %v2785 = vunpack.c.h.b16 %v2590
        %v2786 = vunpack.c.l.b16 %v2591
        %v2787 = vunpack.c.h.b16 %v2591
        %v2788 = vunpack.c.l.b16 %v2592
        %v2789 = vunpack.c.h.b16 %v2592
        %v2790 = vunpack.c.l.b16 %v2593
        %v2791 = vunpack.c.h.b16 %v2593
        %v2792 = vunpack.c.l.b16 %v2594
        %v2793 = vunpack.c.h.b16 %v2594
        %v2794 = vunpack.c.l.b16 %v2595
        %v2795 = vunpack.c.h.b16 %v2595
        %v2796 = vunpack.c.l.b16 %v2596
        %v2797 = vunpack.c.h.b16 %v2596
        %v2798 = vunpack.c.l.b16 %v2597
        %v2799 = vunpack.c.h.b16 %v2597
        %v2800 = vpack.c.b16 %v2676, %v2672
        %v2801 = vpack.c.b16 %v2677, %v2673
        %v2802 = vpack.c.b16 %v2678, %v2674
        %v2803 = vpack.c.b16 %v2679, %v2675
        %v2804 = vpack.c.b16 %v2684, %v2680
        %v2805 = vpack.c.b16 %v2685, %v2681
        %v2806 = vpack.c.b16 %v2686, %v2682
        %v2807 = vpack.c.b16 %v2687, %v2683
        %v2808 = vpack.c.b16 %v2692, %v2688
        %v2809 = vpack.c.b16 %v2693, %v2689
        %v2810 = vpack.c.b16 %v2694, %v2690
        %v2811 = vpack.c.b16 %v2695, %v2691
        %v2812 = vpack.c.b16 %v2700, %v2696
        %v2813 = vpack.c.b16 %v2701, %v2697
        %v2814 = vpack.c.b16 %v2702, %v2698
        %v2815 = vpack.c.b16 %v2703, %v2699
        %v2816 = vpack.c.b16 %v2708, %v2704
        %v2817 = vpack.c.b16 %v2709, %v2705
        %v2818 = vpack.c.b16 %v2710, %v2706
        %v2819 = vpack.c.b16 %v2711, %v2707
        %v2820 = vpack.c.b16 %v2716, %v2712
        %v2821 = vpack.c.b16 %v2717, %v2713
        %v2822 = vpack.c.b16 %v2718, %v2714
        %v2823 = vpack.c.b16 %v2719, %v2715
        %v2824 = vpack.c.b16 %v2724, %v2720
        %v2825 = vpack.c.b16 %v2725, %v2721
        %v2826 = vpack.c.b16 %v2726, %v2722
        %v2827 = vpack.c.b16 %v2727, %v2723
        %v2828 = vpack.c.b16 %v2732, %v2728
        %v2829 = vpack.c.b16 %v2733, %v2729
        %v2830 = vpack.c.b16 %v2734, %v2730
        %v2831 = vpack.c.b16 %v2735, %v2731
        %v2832 = vpack.c.b16 %v2740, %v2736
        %v2833 = vpack.c.b16 %v2741, %v2737
        %v2834 = vpack.c.b16 %v2742, %v2738
        %v2835 = vpack.c.b16 %v2743, %v2739
        %v2836 = vpack.c.b16 %v2748, %v2744
        %v2837 = vpack.c.b16 %v2749, %v2745
        %v2838 = vpack.c.b16 %v2750, %v2746
        %v2839 = vpack.c.b16 %v2751, %v2747
        %v2840 = vpack.c.b16 %v2756, %v2752
        %v2841 = vpack.c.b16 %v2757, %v2753
        %v2842 = vpack.c.b16 %v2758, %v2754
        %v2843 = vpack.c.b16 %v2759, %v2755
        %v2844 = vpack.c.b16 %v2764, %v2760
        %v2845 = vpack.c.b16 %v2765, %v2761
        %v2846 = vpack.c.b16 %v2766, %v2762
        %v2847 = vpack.c.b16 %v2767, %v2763
        %v2848 = vpack.c.b16 %v2772, %v2768
        %v2849 = vpack.c.b16 %v2773, %v2769
        %v2850 = vpack.c.b16 %v2774, %v2770
        %v2851 = vpack.c.b16 %v2775, %v2771
        %v2852 = vpack.c.b16 %v2780, %v2776
        %v2853 = vpack.c.b16 %v2781, %v2777
        %v2854 = vpack.c.b16 %v2782, %v2778
        %v2855 = vpack.c.b16 %v2783, %v2779
        %v2856 = vpack.c.b16 %v2788, %v2784
        %v2857 = vpack.c.b16 %v2789, %v2785
        %v2858 = vpack.c.b16 %v2790, %v2786
        %v2859 = vpack.c.b16 %v2791, %v2787
        %v2860 = vpack.c.b16 %v2796, %v2792
        %v2861 = vpack.c.b16 %v2797, %v2793
        %v2862 = vpack.c.b16 %v2798, %v2794
        %v2863 = vpack.c.b16 %v2799, %v2795
        %2928 = vmatpush.bf16.msra.mxu0 %v2828
        %2929 = vmatpush.bf16.msra.mxu0 %v2824
        %2930 = vmatpush.bf16.msra.mxu0 %v2820
        %2931 = vmatpush.bf16.msra.mxu0 %v2816
        %2932 = vmatpush.bf16.msra.mxu0 %v2812
        %2933 = vmatpush.bf16.msra.mxu0 %v2808
        %2934 = vmatpush.bf16.msra.mxu0 %v2804
        %2935 = vmatpush.bf16.msra.mxu0 %v2800
        %2936 = vmatmul.bf16.gmra.mxu0 %v2526
        %v2937 = vpop.f32.mrf.mxu0
        %v2938 = vadd.f32 %v2600, %v2937
        %v2939 = vpop.f32.mrf.mxu0
        %v2940 = vadd.f32 %v2600, %v2939
        %2941 = vmatmul.bf16.gmra.mxu0 %v2528
        %v2942 = vpop.f32.mrf.mxu0
        %v2943 = vadd.f32 %v2600, %v2942
        %v2944 = vpop.f32.mrf.mxu0
        %v2945 = vadd.f32 %v2600, %v2944
        %2946 = vmatmul.bf16.gmra.mxu0 %v2530
        %v2947 = vpop.f32.mrf.mxu0
        %v2948 = vadd.f32 %v2600, %v2947
        %v2949 = vpop.f32.mrf.mxu0
        %v2950 = vadd.f32 %v2600, %v2949
        %2951 = vmatmul.bf16.gmra.mxu0 %v2532
        %v2952 = vpop.f32.mrf.mxu0
        %v2953 = vadd.f32 %v2600, %v2952
        %v2954 = vpop.f32.mrf.mxu0
        %v2955 = vadd.f32 %v2600, %v2954
        %2956 = vdwg.mxu0
        %2957 = vmatpush.bf16.msra.mxu0 %v2860
        %2958 = vmatpush.bf16.msra.mxu0 %v2856
        %2959 = vmatpush.bf16.msra.mxu0 %v2852
        %2960 = vmatpush.bf16.msra.mxu0 %v2848
        %2961 = vmatpush.bf16.msra.mxu0 %v2844
        %2962 = vmatpush.bf16.msra.mxu0 %v2840
        %2963 = vmatpush.bf16.msra.mxu0 %v2836
        %2964 = vmatpush.bf16.msra.mxu0 %v2832
        %2965 = vmatmul.bf16.gmra.mxu0 %v2527
        %v2966 = vpop.f32.mrf.mxu0
        %v2967 = vadd.f32 %v2938, %v2966
        %v2968 = vpop.f32.mrf.mxu0
        %v2969 = vadd.f32 %v2940, %v2968
        %2970 = vmatmul.bf16.gmra.mxu0 %v2529
        %v2971 = vpop.f32.mrf.mxu0
        %v2972 = vadd.f32 %v2943, %v2971
        %v2973 = vpop.f32.mrf.mxu0
        %v2974 = vadd.f32 %v2945, %v2973
        %2975 = vmatmul.bf16.gmra.mxu0 %v2531
        %v2976 = vpop.f32.mrf.mxu0
        %v2977 = vadd.f32 %v2948, %v2976
        %v2978 = vpop.f32.mrf.mxu0
        %v2979 = vadd.f32 %v2950, %v2978
        %2980 = vmatmul.bf16.gmra.mxu0 %v2533
        %v2981 = vpop.f32.mrf.mxu0
        %v2982 = vadd.f32 %v2953, %v2981
        %v2983 = vpop.f32.mrf.mxu0
        %v2984 = vadd.f32 %v2955, %v2983
        %2985 = vdwg.mxu0
        %2986 = vmatpush.bf16.msra.mxu0 %v2829
        %2987 = vmatpush.bf16.msra.mxu0 %v2825
        %2988 = vmatpush.bf16.msra.mxu0 %v2821
        %2989 = vmatpush.bf16.msra.mxu0 %v2817
        %2990 = vmatpush.bf16.msra.mxu0 %v2813
        %2991 = vmatpush.bf16.msra.mxu0 %v2809
        %2992 = vmatpush.bf16.msra.mxu0 %v2805
        %2993 = vmatpush.bf16.msra.mxu0 %v2801
        %2994 = vmatmul.bf16.gmra.mxu0 %v2526
        %v2995 = vpop.f32.mrf.mxu0
        %v2996 = vadd.f32 %v2601, %v2995
        %v2997 = vpop.f32.mrf.mxu0
        %v2998 = vadd.f32 %v2601, %v2997
        %2999 = vmatmul.bf16.gmra.mxu0 %v2528
        %v3000 = vpop.f32.mrf.mxu0
        %v3001 = vadd.f32 %v2601, %v3000
        %v3002 = vpop.f32.mrf.mxu0
        %v3003 = vadd.f32 %v2601, %v3002
        %3004 = vmatmul.bf16.gmra.mxu0 %v2530
        %v3005 = vpop.f32.mrf.mxu0
        %v3006 = vadd.f32 %v2601, %v3005
        %v3007 = vpop.f32.mrf.mxu0
        %v3008 = vadd.f32 %v2601, %v3007
        %3009 = vmatmul.bf16.gmra.mxu0 %v2532
        %v3010 = vpop.f32.mrf.mxu0
        %v3011 = vadd.f32 %v2601, %v3010
        %v3012 = vpop.f32.mrf.mxu0
        %v3013 = vadd.f32 %v2601, %v3012
        %3014 = vdwg.mxu0
        %3015 = vmatpush.bf16.msra.mxu0 %v2861
        %3016 = vmatpush.bf16.msra.mxu0 %v2857
        %3017 = vmatpush.bf16.msra.mxu0 %v2853
        %3018 = vmatpush.bf16.msra.mxu0 %v2849
        %3019 = vmatpush.bf16.msra.mxu0 %v2845
        %3020 = vmatpush.bf16.msra.mxu0 %v2841
        %3021 = vmatpush.bf16.msra.mxu0 %v2837
        %3022 = vmatpush.bf16.msra.mxu0 %v2833
        %3023 = vmatmul.bf16.gmra.mxu0 %v2527
        %v3024 = vpop.f32.mrf.mxu0
        %v3025 = vadd.f32 %v2996, %v3024
        %v3026 = vpop.f32.mrf.mxu0
        %v3027 = vadd.f32 %v2998, %v3026
        %3028 = vmatmul.bf16.gmra.mxu0 %v2529
        %v3029 = vpop.f32.mrf.mxu0
        %v3030 = vadd.f32 %v3001, %v3029
        %v3031 = vpop.f32.mrf.mxu0
        %v3032 = vadd.f32 %v3003, %v3031
        %3033 = vmatmul.bf16.gmra.mxu0 %v2531
        %v3034 = vpop.f32.mrf.mxu0
        %v3035 = vadd.f32 %v3006, %v3034
        %v3036 = vpop.f32.mrf.mxu0
        %v3037 = vadd.f32 %v3008, %v3036
        %3038 = vmatmul.bf16.gmra.mxu0 %v2533
        %v3039 = vpop.f32.mrf.mxu0
        %v3040 = vadd.f32 %v3011, %v3039
        %v3041 = vpop.f32.mrf.mxu0
        %v3042 = vadd.f32 %v3013, %v3041
        %3043 = vdwg.mxu0
        %3044 = vmatpush.bf16.msra.mxu0 %v2830
        %3045 = vmatpush.bf16.msra.mxu0 %v2826
        %3046 = vmatpush.bf16.msra.mxu0 %v2822
        %3047 = vmatpush.bf16.msra.mxu0 %v2818
        %3048 = vmatpush.bf16.msra.mxu0 %v2814
        %3049 = vmatpush.bf16.msra.mxu0 %v2810
        %3050 = vmatpush.bf16.msra.mxu0 %v2806
        %3051 = vmatpush.bf16.msra.mxu0 %v2802
        %3052 = vmatmul.bf16.gmra.mxu0 %v2526
        %v3053 = vpop.f32.mrf.mxu0
        %v3054 = vadd.f32 %v2602, %v3053
        %v3055 = vpop.f32.mrf.mxu0
        %v3056 = vadd.f32 %v2602, %v3055
        %3057 = vmatmul.bf16.gmra.mxu0 %v2528
        %v3058 = vpop.f32.mrf.mxu0
        %v3059 = vadd.f32 %v2602, %v3058
        %v3060 = vpop.f32.mrf.mxu0
        %v3061 = vadd.f32 %v2602, %v3060
        %3062 = vmatmul.bf16.gmra.mxu0 %v2530
        %v3063 = vpop.f32.mrf.mxu0
        %v3064 = vadd.f32 %v2602, %v3063
        %v3065 = vpop.f32.mrf.mxu0
        %v3066 = vadd.f32 %v2602, %v3065
        %3067 = vmatmul.bf16.gmra.mxu0 %v2532
        %v3068 = vpop.f32.mrf.mxu0
        %v3069 = vadd.f32 %v2602, %v3068
        %v3070 = vpop.f32.mrf.mxu0
        %v3071 = vadd.f32 %v2602, %v3070
        %3072 = vdwg.mxu0
        %3073 = vmatpush.bf16.msra.mxu0 %v2862
        %3074 = vmatpush.bf16.msra.mxu0 %v2858
        %3075 = vmatpush.bf16.msra.mxu0 %v2854
        %3076 = vmatpush.bf16.msra.mxu0 %v2850
        %3077 = vmatpush.bf16.msra.mxu0 %v2846
        %3078 = vmatpush.bf16.msra.mxu0 %v2842
        %3079 = vmatpush.bf16.msra.mxu0 %v2838
        %3080 = vmatpush.bf16.msra.mxu0 %v2834
        %3081 = vmatmul.bf16.gmra.mxu0 %v2527
        %v3082 = vpop.f32.mrf.mxu0
        %v3083 = vadd.f32 %v3054, %v3082
        %v3084 = vpop.f32.mrf.mxu0
        %v3085 = vadd.f32 %v3056, %v3084
        %3086 = vmatmul.bf16.gmra.mxu0 %v2529
        %v3087 = vpop.f32.mrf.mxu0
        %v3088 = vadd.f32 %v3059, %v3087
        %v3089 = vpop.f32.mrf.mxu0
        %v3090 = vadd.f32 %v3061, %v3089
        %3091 = vmatmul.bf16.gmra.mxu0 %v2531
        %v3092 = vpop.f32.mrf.mxu0
        %v3093 = vadd.f32 %v3064, %v3092
        %v3094 = vpop.f32.mrf.mxu0
        %v3095 = vadd.f32 %v3066, %v3094
        %3096 = vmatmul.bf16.gmra.mxu0 %v2533
        %v3097 = vpop.f32.mrf.mxu0
        %v3098 = vadd.f32 %v3069, %v3097
        %v3099 = vpop.f32.mrf.mxu0
        %v3100 = vadd.f32 %v3071, %v3099
        %3101 = vdwg.mxu0
        %3102 = vmatpush.bf16.msra.mxu0 %v2831
        %3103 = vmatpush.bf16.msra.mxu0 %v2827
        %3104 = vmatpush.bf16.msra.mxu0 %v2823
        %3105 = vmatpush.bf16.msra.mxu0 %v2819
        %3106 = vmatpush.bf16.msra.mxu0 %v2815
        %3107 = vmatpush.bf16.msra.mxu0 %v2811
        %3108 = vmatpush.bf16.msra.mxu0 %v2807
        %3109 = vmatpush.bf16.msra.mxu0 %v2803
        %3110 = vmatmul.bf16.gmra.mxu0 %v2526
        %v3111 = vpop.f32.mrf.mxu0
        %v3112 = vadd.f32 %v2603, %v3111
        %v3113 = vpop.f32.mrf.mxu0
        %v3114 = vadd.f32 %v2603, %v3113
        %3115 = vmatmul.bf16.gmra.mxu0 %v2528
        %v3116 = vpop.f32.mrf.mxu0
        %v3117 = vadd.f32 %v2603, %v3116
        %v3118 = vpop.f32.mrf.mxu0
        %v3119 = vadd.f32 %v2603, %v3118
        %3120 = vmatmul.bf16.gmra.mxu0 %v2530
        %v3121 = vpop.f32.mrf.mxu0
        %v3122 = vadd.f32 %v2603, %v3121
        %v3123 = vpop.f32.mrf.mxu0
        %v3124 = vadd.f32 %v2603, %v3123
        %3125 = vmatmul.bf16.gmra.mxu0 %v2532
        %v3126 = vpop.f32.mrf.mxu0
        %v3127 = vadd.f32 %v2603, %v3126
        %v3128 = vpop.f32.mrf.mxu0
        %v3129 = vadd.f32 %v2603, %v3128
        %3130 = vdwg.mxu0
        %3131 = vmatpush.bf16.msra.mxu0 %v2863
        %3132 = vmatpush.bf16.msra.mxu0 %v2859
        %3133 = vmatpush.bf16.msra.mxu0 %v2855
        %3134 = vmatpush.bf16.msra.mxu0 %v2851
        %3135 = vmatpush.bf16.msra.mxu0 %v2847
        %3136 = vmatpush.bf16.msra.mxu0 %v2843
        %3137 = vmatpush.bf16.msra.mxu0 %v2839
        %3138 = vmatpush.bf16.msra.mxu0 %v2835
        %3139 = vmatmul.bf16.gmra.mxu0 %v2527
        %v3140 = vpop.f32.mrf.mxu0
        %v3141 = vadd.f32 %v3112, %v3140
        %v3142 = vpop.f32.mrf.mxu0
        %v3143 = vadd.f32 %v3114, %v3142
        %3144 = vmatmul.bf16.gmra.mxu0 %v2529
        %v3145 = vpop.f32.mrf.mxu0
        %v3146 = vadd.f32 %v3117, %v3145
        %v3147 = vpop.f32.mrf.mxu0
        %v3148 = vadd.f32 %v3119, %v3147
        %3149 = vmatmul.bf16.gmra.mxu0 %v2531
        %v3150 = vpop.f32.mrf.mxu0
        %v3151 = vadd.f32 %v3122, %v3150
        %v3152 = vpop.f32.mrf.mxu0
        %v3153 = vadd.f32 %v3124, %v3152
        %3154 = vmatmul.bf16.gmra.mxu0 %v2533
        %v3155 = vpop.f32.mrf.mxu0
        %v3156 = vadd.f32 %v3127, %v3155
        %v3157 = vpop.f32.mrf.mxu0
        %v3158 = vadd.f32 %v3129, %v3157
        %3159 = vdwg.mxu0
        %v3160 = vsub.f32 0.0, %v3083
        %v3161 = vsub.f32 0.0, %v3141
        %v3162 = vsub.f32 0.0, %v3085
        %v3163 = vsub.f32 0.0, %v3143
        %v3164 = vsub.f32 0.0, %v3088
        %v3165 = vsub.f32 0.0, %v3146
        %v3166 = vsub.f32 0.0, %v3090
        %v3167 = vsub.f32 0.0, %v3148
        %v3168 = vsub.f32 0.0, %v3093
        %v3169 = vsub.f32 0.0, %v3151
        %v3170 = vsub.f32 0.0, %v3095
        %v3171 = vsub.f32 0.0, %v3153
        %v3172 = vsub.f32 0.0, %v3098
        %v3173 = vsub.f32 0.0, %v3156
        %v3174 = vsub.f32 0.0, %v3100
        %v3175 = vsub.f32 0.0, %v3158
        %v3176 = vmul.f32 %v3160, 1.442695
        %v3177 = vpow.pop %v3176
        %v3178 = vmul.f32 %v3161, 1.442695
        %v3179 = vpow.pop %v3178
        %v3180 = vmul.f32 %v3162, 1.442695
        %v3181 = vpow.pop %v3180
        %v3182 = vmul.f32 %v3163, 1.442695
        %v3183 = vpow.pop %v3182
        %v3184 = vmul.f32 %v3164, 1.442695
        %v3185 = vpow.pop %v3184
        %v3186 = vmul.f32 %v3165, 1.442695
        %v3187 = vpow.pop %v3186
        %v3188 = vmul.f32 %v3166, 1.442695
        %v3189 = vpow.pop %v3188
        %v3190 = vmul.f32 %v3167, 1.442695
        %v3191 = vpow.pop %v3190
        %v3192 = vmul.f32 %v3168, 1.442695
        %v3193 = vpow.pop %v3192
        %v3194 = vmul.f32 %v3169, 1.442695
        %v3195 = vpow.pop %v3194
        %v3196 = vmul.f32 %v3170, 1.442695
        %v3197 = vpow.pop %v3196
        %v3198 = vmul.f32 %v3171, 1.442695
        %v3199 = vpow.pop %v3198
        %v3200 = vmul.f32 %v3172, 1.442695
        %v3201 = vpow.pop %v3200
        %v3202 = vmul.f32 %v3173, 1.442695
        %v3203 = vpow.pop %v3202
        %v3204 = vmul.f32 %v3174, 1.442695
        %v3205 = vpow.pop %v3204
        %v3206 = vmul.f32 %v3175, 1.442695
        %v3207 = vpow.pop %v3206
        %v3208 = vadd.f32 %v3177, 1.0
        %v3209 = vadd.f32 %v3179, 1.0
        %v3210 = vadd.f32 %v3181, 1.0
        %v3211 = vadd.f32 %v3183, 1.0
        %v3212 = vadd.f32 %v3185, 1.0
        %v3213 = vadd.f32 %v3187, 1.0
        %v3214 = vadd.f32 %v3189, 1.0
        %v3215 = vadd.f32 %v3191, 1.0
        %v3216 = vadd.f32 %v3193, 1.0
        %v3217 = vadd.f32 %v3195, 1.0
        %v3218 = vadd.f32 %v3197, 1.0
        %v3219 = vadd.f32 %v3199, 1.0
        %v3220 = vadd.f32 %v3201, 1.0
        %v3221 = vadd.f32 %v3203, 1.0
        %v3222 = vadd.f32 %v3205, 1.0
        %v3223 = vadd.f32 %v3207, 1.0
        %v3224 = vrcp.pop %v3208
        %v3225 = vrcp.pop %v3209
        %v3226 = vrcp.pop %v3210
        %v3227 = vrcp.pop %v3211
        %v3228 = vrcp.pop %v3212
        %v3229 = vrcp.pop %v3213
        %v3230 = vrcp.pop %v3214
        %v3231 = vrcp.pop %v3215
        %v3232 = vrcp.pop %v3216
        %v3233 = vrcp.pop %v3217
        %v3234 = vrcp.pop %v3218
        %v3235 = vrcp.pop %v3219
        %v3236 = vrcp.pop %v3220
        %v3237 = vrcp.pop %v3221
        %v3238 = vrcp.pop %v3222
        %v3239 = vrcp.pop %v3223
        %v3240 = vmul.f32 %v3224, %v2967
        %v3241 = vmul.f32 %v3225, %v3025
        %v3242 = vmul.f32 %v3226, %v2969
        %v3243 = vmul.f32 %v3227, %v3027
        %v3244 = vmul.f32 %v3228, %v2972
        %v3245 = vmul.f32 %v3229, %v3030
        %v3246 = vmul.f32 %v3230, %v2974
        %v3247 = vmul.f32 %v3231, %v3032
        %v3248 = vmul.f32 %v3232, %v2977
        %v3249 = vmul.f32 %v3233, %v3035
        %v3250 = vmul.f32 %v3234, %v2979
        %v3251 = vmul.f32 %v3235, %v3037
        %v3252 = vmul.f32 %v3236, %v2982
        %v3253 = vmul.f32 %v3237, %v3040
        %v3254 = vmul.f32 %v3238, %v2984
        %v3255 = vmul.f32 %v3239, %v3042
        %v3256 = vpack.c.bf16 %v3241, %v3240
        %v3257 = vpack.c.bf16 %v3243, %v3242
        %v3258 = vpack.c.bf16 %v3245, %v3244
        %v3259 = vpack.c.bf16 %v3247, %v3246
        %v3260 = vpack.c.bf16 %v3249, %v3248
        %v3261 = vpack.c.bf16 %v3251, %v3250
        %v3262 = vpack.c.bf16 %v3253, %v3252
        %v3263 = vpack.c.bf16 %v3255, %v3254
        %3264 = vst [vmem:[%s237] sm:$0xff] %v3256
        %3265 = vst [vmem:[%s237 + $0x8] sm:$0xff] %v3257
        %3266 = vst [vmem:[%s237 + $0x10] sm:$0xff] %v3258
        %3267 = vst [vmem:[%s237 + $0x18] sm:$0xff] %v3259
        %3268 = vst [vmem:[%s237 + $0x20] sm:$0xff] %v3260
        %3269 = vst [vmem:[%s237 + $0x28] sm:$0xff] %v3261
        %3270 = vst [vmem:[%s237 + $0x30] sm:$0xff] %v3262
        %3271 = vst [vmem:[%s237 + $0x38] sm:$0xff] %v3263
        %s3272 = sand.u32 %s138, 1
        %s3273 = scalar_lea.sflag [#allocation4], %s3272
        %s3274 = sand.u32 %s138, 1
        %s3275 = smul.addr %s3274, 64
        %s3276 = scalar_lea.vmem [#allocation5], %s3275
        // Predicated region
        $region45: #{tpu_custom_call.1} parent=39 // pred_check
          %p3277 = pneg %p148
        $region46: #{tpu_custom_call.1} parent=39 // pred_check_branch
          %3279 = sbr.rel (%p3277) target = $region48
        $region47: #{tpu_custom_call.1} parent=39 // pred_region
          %s3280 = smul.u32 8, %s20
          %3282 = vsyncadd %s3273, 0
          %s3283 = smul.addr %s3280, 2
          %s3284 = smul.addr %s3283, 4
          %s3285 = scalar_lea.hbm %s5, %s3284
          %s3286 = sshll.u32 %s3276, 4
          %s3287 = int_to_ptr.vmem [resolvable:$true] %s3286
          %s3288 = sshll.u32 %s3285, 4
          %s3289 = int_to_ptr.hbm [resolvable:$true] %s3288
          %3294 = dma.vmem_to_hbm [thread:$0]  %s3287, 1024, %s3289, %s3273, 128, 128, 8
        $region48: #{tpu_custom_call.1} parent=39 // pred_fallthru
          _
      $region40: #{tpu_custom_call.1} parent=5 // pred_fallthru
        _
      %p3295 = scmp.le.s32.totalorder 2, %s15
      // Predicated region
      $region49: #{tpu_custom_call.1} parent=5 // pred_check
        %p3296 = pneg %p3295
      $region50: #{tpu_custom_call.1} parent=5 // pred_check_branch
        %3298 = sbr.rel (%p3296) target = $region52
      $region51: #{tpu_custom_call.1} parent=5 // pred_region
        %s3299 = ssub.s32 %s15, 2
        // Predicated region
        $region53: #{tpu_custom_call.1} parent=51 // pred_check
          %p3300 = pneg %p154
        $region54: #{tpu_custom_call.1} parent=51 // pred_check_branch
          %3302 = sbr.rel (%p3300) target = $region56
        $region55: #{tpu_custom_call.1} parent=51 // pred_region
          %s3303 = sand.u32 %s139, 1
          %s3304 = scalar_lea.sflag [#allocation4], %s3303
          %s3305 = sand.u32 %s139, 1
          %s3306 = smul.addr %s3305, 64
          %s3307 = scalar_lea.vmem [#allocation5], %s3306
          %3309 = dma.done %s3304, 1024
        $region56: #{tpu_custom_call.1} parent=51 // pred_fallthru
          _
      $region52: #{tpu_custom_call.1} parent=5 // pred_fallthru
        _
    $region6: #{tpu_custom_call.1} parent=1 // loop_footer
      %s19 = sadd.s32 1, %s15
    $region7: #{tpu_custom_call.1} parent=1 // loop_footer_branch
      %14 = sbr.rel target = $region3
    $region8: #{tpu_custom_call.1} parent=1 // loop_exit
      _
    %3310 = vsyncpa [#allocation3], 1
    %s3311 = scalar_lea.sflag [#allocation3], 1
    %3312 = vsyncpa %s3311, 1
    %3313 = vsyncpa [#allocation4], 1
    %s3314 = scalar_lea.sflag [#allocation4], 1
    %3315 = vsyncpa %s3314, 1

</llo_original>
